<compile_context>
chip_gen: v7x
topology: tpu7x:2x2x1
jax: 0.10.0
libtpu: 0.0.40
codegen_flags: <defaults>
</compile_context>

<pallas_src>
import jax
import jax.numpy as jnp
from jax.experimental import pallas as pl
from jax.experimental.pallas import tpu as pltpu

# Each direction computes diff = x[A-shifted] - x[B-shifted] over the
# overlapping region; A/B are per-axis offsets in {0, 1} over (D, H, W).
# An axis is "sliced" (its extent shrinks by 1) iff the two offsets differ.
_DIR_OFFSETS = [
    ((1, 0, 0), (0, 0, 0)),   # 1:  [1:,:,:]   - [:-1,:,:]
    ((0, 1, 0), (0, 0, 0)),   # 2:  [:,1:,:]   - [:,:-1,:]
    ((0, 0, 1), (0, 0, 0)),   # 3:  [:,:,1:]   - [:,:,:-1]
    ((1, 1, 0), (0, 0, 0)),   # 4:  [1:,1:,:]  - [:-1,:-1,:]
    ((1, 0, 0), (0, 1, 0)),   # 5:  [1:,:-1,:] - [:-1,1:,:]
    ((0, 1, 1), (0, 0, 0)),   # 6:  [:,1:,1:]  - [:,:-1,:-1]
    ((0, 1, 0), (0, 0, 1)),   # 7:  [:,1:,:-1] - [:,:-1,1:]
    ((1, 0, 0), (0, 0, 1)),   # 8:  [1:,:,:-1] - [:-1,:,1:]
    ((1, 0, 1), (0, 0, 0)),   # 9:  [1:,:,1:]  - [:-1,:,:-1]
    ((1, 0, 0), (0, 1, 1)),   # 10: [1:,:-1,:-1] - [:-1,1:,1:]
    ((1, 1, 0), (0, 0, 1)),   # 11: [1:,1:,:-1]  - [:-1,:-1,1:]
    ((0, 0, 0), (1, 1, 1)),   # 12: [:-1,:-1,:-1] - [1:,1:,1:]
    ((0, 1, 0), (1, 0, 1)),   # 13: [:-1,1:,:-1]  - [1:,:-1,1:]
]


def _gc3d_partials_kernel(x_ref, t_ref, out_ref):
    x = x_ref[0].astype(jnp.float32)   # (D, H, W)
    t = t_ref[0].astype(jnp.float32)
    D, H, W = x.shape

    # ---- BCE partial (un-normalized sum, reduced over D and H only).
    #      PyTorch BCELoss clamps log at -100.  Uses the 1-FMA-friendlier
    #      form  t*log(x) + (1-t)*log(1-x) == log(1-x) + t*(log(x)-log(1-x)).
    log_x = jnp.maximum(jnp.log(x), -100.0)
    log_1mx = jnp.maximum(jnp.log(1.0 - x), -100.0)
    bce_elem = log_1mx + t * (log_x - log_1mx)
    bce_row = -jnp.sum(jnp.sum(bce_elem, axis=0), axis=0, keepdims=True)  # (1, W)

    # ---- shared shifted copies: shifted[., j, l] = a[., j+dh, l+dw] (wrap) ----
    # (kept as concatenates: proven to lower cleanly; the wrapped row/column is
    #  excluded from the sums by the (H, W) masks below)
    def shift_w(a):
        return jnp.concatenate([a[:, :, 1:], a[:, :, :1]], axis=2)

    def shift_h(a):
        return jnp.concatenate([a[:, 1:, :], a[:, :1, :]], axis=1)

    x_h, x_w = shift_h(x), shift_w(x)
    x_hw = shift_w(x_h)
    t_h, t_w = shift_h(t), shift_w(t)
    t_hw = shift_w(t_h)

    x_var = {(0, 0): x, (1, 0): x_h, (0, 1): x_w, (1, 1): x_hw}
    t_var = {(0, 0): t, (1, 0): t_h, (0, 1): t_w, (1, 1): t_hw}

    # ---- (H, W) masks zeroing the wrapped last row / column.  Applied to the
    #      D-reduced (H, W) partial maps, NOT the full volumes. ----
    col = jax.lax.broadcasted_iota(jnp.int32, (H, W), 1)
    row = jax.lax.broadcasted_iota(jnp.int32, (H, W), 0)
    m_w = (col < (W - 1)).astype(jnp.float32)
    m_h = (row < (H - 1)).astype(jnp.float32)
    m_hw = m_h * m_w

    for idx, ((ad, ah, aw), (bd, bh, bw)) in enumerate(_DIR_OFFSETS):
        xa, xb = x_var[(ah, aw)], x_var[(bh, bw)]
        ta, tb = t_var[(ah, aw)], t_var[(bh, bw)]
        if ad != bd:          # D axis sliced: cheap leading-dim offset, extent D-1
            di = xa[ad:D - 1 + ad] - xb[bd:D - 1 + bd]
            dt = ta[ad:D - 1 + ad] - tb[bd:D - 1 + bd]
        else:
            di = xa - xb
            dt = ta - tb

        # Reduce over D first (pure VALU adds) -> (H, W) maps.
        p = jnp.sum(di * dt, axis=0)
        q = jnp.sum(dt * dt, axis=0)

        h_sliced = (ah, bh) != (0, 0)
        w_sliced = (aw, bw) != (0, 0)
        if h_sliced and w_sliced:
            m = m_hw
        elif h_sliced:
            m = m_h
        elif w_sliced:
            m = m_w
        else:
            m = None
        if m is not None:
            p = p * m
            q = q * m

        # Reduce over H (sublanes) -> lane-dense (1, W) rows; store directly.
        out_ref[0, idx:idx + 1, :] = jnp.sum(p, axis=0, keepdims=True)
        out_ref[0, 13 + idx:14 + idx, :] = jnp.sum(q, axis=0, keepdims=True)

    out_ref[0, 26:27, :] = bce_row


def gc_3d_v2_loss(inp, tgt, lmda):
    """Pallas TPU implementation of GC_3D_v2.forward(input, target)."""
    assert inp.shape == tgt.shape and inp.ndim == 5, "expect NCDHW inputs"
    B, C, D, H, W = inp.shape
    N = B * C
    # Keep native dtype; the kernel casts to f32 on load.
    x = inp.reshape(N, D, H, W)
    t = tgt.reshape(N, D, H, W)

    in_block = D * H * W * x.dtype.itemsize
    f32_block = D * H * W * 4
    # 2 inputs x 2 pipeline buffers + ~6 shifted f32 copies + temporaries, with
    # a cap that stays below v7x's 64 MiB physical VMEM.
    vmem_limit = int(min(48 * 1024 * 1024,
                         max(16 * 1024 * 1024,
                             4 * in_block + 14 * f32_block + (2 << 20))))

    partial_rows = pl.pallas_call(
        _gc3d_partials_kernel,
        out_shape=jax.ShapeDtypeStruct((N, 27, W), jnp.float32),
        grid=(N,),
        in_specs=[
            pl.BlockSpec((1, D, H, W), lambda n: (n, 0, 0, 0)),
            pl.BlockSpec((1, D, H, W), lambda n: (n, 0, 0, 0)),
        ],
        out_specs=pl.BlockSpec((1, 27, W), lambda n: (n, 0, 0)),
        compiler_params=pltpu.CompilerParams(
            dimension_semantics=("parallel",),
            vmem_limit_bytes=vmem_limit,
        ),
    )(x, t)
    # TODO(synk): for volumes where a single (D, H, W) block exceeds VMEM,
    # additionally slab D with a 1-plane halo.

    # Tiny final combine (global sums over N and W, ratios, lambda*bce) in JAX.
    sums = jnp.sum(partial_rows, axis=(0, 2))    # (27,)
    nums = sums[0:13]                            # global numerators
    dens = sums[13:26]                           # global denominators
    bce = sums[26] / jnp.float32(inp.size)

    smooth = jnp.float32(1e-5)
    boundary = 1.0 - jnp.sum(nums / (dens + smooth)) / 13.0
    return lmda * bce + boundary


# ----------------------- plain-JAX reference (verification) -----------------
_P = slice(1, None)    # "1:"
_M = slice(None, -1)   # ":-1"
_F = slice(None)       # ":"

_DIRS = [
    ((_P, _F, _F), (_M, _F, _F)),
    ((_F, _P, _F), (_F, _M, _F)),
    ((_F, _F, _P), (_F, _F, _M)),
    ((_P, _P, _F), (_M, _M, _F)),
    ((_P, _M, _F), (_M, _P, _F)),
    ((_F, _P, _P), (_F, _M, _M)),
    ((_F, _P, _M), (_F, _M, _P)),
    ((_P, _F, _M), (_M, _F, _P)),
    ((_P, _F, _P), (_M, _F, _M)),
    ((_P, _M, _M), (_M, _P, _P)),
    ((_P, _P, _M), (_M, _M, _P)),
    ((_M, _M, _M), (_P, _P, _P)),
    ((_M, _P, _M), (_P, _M, _P)),
]


def _gc_3d_v2_ref(inp, tgt, lmda):
    x = inp.astype(jnp.float32)
    t = tgt.astype(jnp.float32)
    bce = jnp.mean(
        -(t * jnp.maximum(jnp.log(x), -100.0)
          + (1.0 - t) * jnp.maximum(jnp.log(1.0 - x), -100.0)))
    smooth = 1e-5
    ratio_sum = 0.0
    for sa, sb in _DIRS:
        ia = (Ellipsis,) + sa
        ib = (Ellipsis,) + sb
        di = x[ia] - x[ib]
        dt = t[ia] - t[ib]
        ratio_sum = ratio_sum + jnp.sum(di * dt) / (jnp.sum(dt * dt) + smooth)
    boundary = 1.0 - ratio_sum / 13.0
    return lmda * bce + boundary


if __name__ == "__main__":
    key = jax.random.PRNGKey(0)
    k1, k2 = jax.random.split(key)
    # NCDHW; input values strictly inside (0, 1) as BCELoss expects.
    B, C, D, H, W = 2, 2, 8, 16, 128
    inp = jax.random.uniform(k1, (B, C, D, H, W), jnp.float32,
                             minval=0.01, maxval=0.99)
    tgt = (jax.random.uniform(k2, (B, C, D, H, W), jnp.float32) > 0.5
           ).astype(jnp.float32)
    lmda = 0.5

    loss = gc_3d_v2_loss(inp, tgt, lmda)
    jax.block_until_ready(loss)

    ref = _gc_3d_v2_ref(inp, tgt, lmda)
    if not jnp.allclose(loss, ref, rtol=1e-4, atol=1e-4):
        raise AssertionError(f"mismatch: pallas={loss} ref={ref}")

    print("KERNEL_OK")
</pallas_src>

<mosaic_0001>
module attributes {stable_mosaic.version = 11 : i64} {
  func.func @_gc3d_partials_kernel(%arg0: i32, %arg1: memref<1x8x16x128xf32, #tpu.memory_space<vmem>>, %arg2: memref<1x8x16x128xf32, #tpu.memory_space<vmem>>, %arg3: memref<1x27x128xf32, #tpu.memory_space<vmem>>) attributes {dimension_semantics = [#tpu.dimension_semantics<parallel>], iteration_bounds = array<i64: 4>, scalar_prefetch = 0 : i64, scratch_operands = 0 : i64, tpu.core_type = #tpu.core_type<tc>, window_params = [{transform_indices = @transform_0, window_bounds = array<i64: 1, 8, 16, 128>}, {transform_indices = @transform_1, window_bounds = array<i64: 1, 8, 16, 128>}, {transform_indices = @transform_2, window_bounds = array<i64: 1, 27, 128>}]} {
    %c0 = arith.constant 0 : index
    %c0_0 = arith.constant 0 : index
    %c0_1 = arith.constant 0 : index
    %c0_2 = arith.constant 0 : index
    %0 = vector.load %arg1[%c0, %c0_0, %c0_1, %c0_2] : memref<1x8x16x128xf32, #tpu.memory_space<vmem>>, vector<1x8x16x128xf32>
    %1 = vector.shape_cast %0 : vector<1x8x16x128xf32> to vector<8x16x128xf32>
    %c0_3 = arith.constant 0 : index
    %c0_4 = arith.constant 0 : index
    %c0_5 = arith.constant 0 : index
    %c0_6 = arith.constant 0 : index
    %2 = vector.load %arg2[%c0_3, %c0_4, %c0_5, %c0_6] : memref<1x8x16x128xf32, #tpu.memory_space<vmem>>, vector<1x8x16x128xf32>
    %3 = vector.shape_cast %2 : vector<1x8x16x128xf32> to vector<8x16x128xf32>
    %4 = math.log %1 : vector<8x16x128xf32>
    %cst = arith.constant -1.000000e+02 : f32
    %5 = vector.broadcast %cst : f32 to vector<8x16x128xf32>
    %6 = arith.maximumf %4, %5 : vector<8x16x128xf32>
    %cst_7 = arith.constant 1.000000e+00 : f32
    %7 = vector.broadcast %cst_7 : f32 to vector<8x16x128xf32>
    %8 = arith.subf %7, %1 : vector<8x16x128xf32>
    %9 = math.log %8 : vector<8x16x128xf32>
    %cst_8 = arith.constant -1.000000e+02 : f32
    %10 = vector.broadcast %cst_8 : f32 to vector<8x16x128xf32>
    %11 = arith.maximumf %9, %10 : vector<8x16x128xf32>
    %12 = arith.subf %6, %11 : vector<8x16x128xf32>
    %13 = arith.mulf %3, %12 : vector<8x16x128xf32>
    %14 = arith.addf %11, %13 : vector<8x16x128xf32>
    %cst_9 = arith.constant dense<0.000000e+00> : vector<16x128xf32>
    %15 = vector.multi_reduction <add>, %14, %cst_9 [0] : vector<8x16x128xf32> to vector<16x128xf32>
    %cst_10 = arith.constant dense<0.000000e+00> : vector<128xf32>
    %16 = vector.multi_reduction <add>, %15, %cst_10 [0] : vector<16x128xf32> to vector<128xf32>
    %17 = vector.shape_cast %16 : vector<128xf32> to vector<1x128xf32>
    %cst_11 = arith.constant 0.000000e+00 : f32
    %18 = vector.broadcast %cst_11 : f32 to vector<1x128xf32>
    %19 = arith.subf %18, %17 : vector<1x128xf32>
    %20 = vector.extract_strided_slice %1 {offsets = [0, 1, 0], sizes = [8, 15, 128], strides = [1, 1, 1]} : vector<8x16x128xf32> to vector<8x15x128xf32>
    %21 = vector.extract_strided_slice %1 {offsets = [0, 0, 0], sizes = [8, 1, 128], strides = [1, 1, 1]} : vector<8x16x128xf32> to vector<8x1x128xf32>
    %22 = tpu.concatenate %20, %21 in 1 : vector<8x15x128xf32>, vector<8x1x128xf32> -> vector<8x16x128xf32>
    %23 = vector.extract_strided_slice %1 {offsets = [0, 0, 1], sizes = [8, 16, 127], strides = [1, 1, 1]} : vector<8x16x128xf32> to vector<8x16x127xf32>
    %24 = vector.extract_strided_slice %1 {offsets = [0, 0, 0], sizes = [8, 16, 1], strides = [1, 1, 1]} : vector<8x16x128xf32> to vector<8x16x1xf32>
    %25 = tpu.concatenate %23, %24 in 2 : vector<8x16x127xf32>, vector<8x16x1xf32> -> vector<8x16x128xf32>
    %26 = vector.extract_strided_slice %22 {offsets = [0, 0, 1], sizes = [8, 16, 127], strides = [1, 1, 1]} : vector<8x16x128xf32> to vector<8x16x127xf32>
    %27 = vector.extract_strided_slice %22 {offsets = [0, 0, 0], sizes = [8, 16, 1], strides = [1, 1, 1]} : vector<8x16x128xf32> to vector<8x16x1xf32>
    %28 = tpu.concatenate %26, %27 in 2 : vector<8x16x127xf32>, vector<8x16x1xf32> -> vector<8x16x128xf32>
    %29 = vector.extract_strided_slice %3 {offsets = [0, 1, 0], sizes = [8, 15, 128], strides = [1, 1, 1]} : vector<8x16x128xf32> to vector<8x15x128xf32>
    %30 = vector.extract_strided_slice %3 {offsets = [0, 0, 0], sizes = [8, 1, 128], strides = [1, 1, 1]} : vector<8x16x128xf32> to vector<8x1x128xf32>
    %31 = tpu.concatenate %29, %30 in 1 : vector<8x15x128xf32>, vector<8x1x128xf32> -> vector<8x16x128xf32>
    %32 = vector.extract_strided_slice %3 {offsets = [0, 0, 1], sizes = [8, 16, 127], strides = [1, 1, 1]} : vector<8x16x128xf32> to vector<8x16x127xf32>
    %33 = vector.extract_strided_slice %3 {offsets = [0, 0, 0], sizes = [8, 16, 1], strides = [1, 1, 1]} : vector<8x16x128xf32> to vector<8x16x1xf32>
    %34 = tpu.concatenate %32, %33 in 2 : vector<8x16x127xf32>, vector<8x16x1xf32> -> vector<8x16x128xf32>
    %35 = vector.extract_strided_slice %31 {offsets = [0, 0, 1], sizes = [8, 16, 127], strides = [1, 1, 1]} : vector<8x16x128xf32> to vector<8x16x127xf32>
    %36 = vector.extract_strided_slice %31 {offsets = [0, 0, 0], sizes = [8, 16, 1], strides = [1, 1, 1]} : vector<8x16x128xf32> to vector<8x16x1xf32>
    %37 = tpu.concatenate %35, %36 in 2 : vector<8x16x127xf32>, vector<8x16x1xf32> -> vector<8x16x128xf32>
    %38 = tpu.iota {dimensions = array<i32: 1>} : vector<16x128xi32>
    %39 = tpu.iota {dimensions = array<i32: 0>} : vector<16x128xi32>
    %c127_i32 = arith.constant 127 : i32
    %40 = vector.broadcast %c127_i32 : i32 to vector<16x128xi32>
    %41 = arith.cmpi slt, %38, %40 : vector<16x128xi32>
    %42 = arith.extui %41 : vector<16x128xi1> to vector<16x128xi32>
    %43 = arith.sitofp %42 : vector<16x128xi32> to vector<16x128xf32>
    %c15_i32 = arith.constant 15 : i32
    %44 = vector.broadcast %c15_i32 : i32 to vector<16x128xi32>
    %45 = arith.cmpi slt, %39, %44 : vector<16x128xi32>
    %46 = arith.extui %45 : vector<16x128xi1> to vector<16x128xi32>
    %47 = arith.sitofp %46 : vector<16x128xi32> to vector<16x128xf32>
    %48 = arith.mulf %47, %43 : vector<16x128xf32>
    %49 = vector.extract_strided_slice %1 {offsets = [1, 0, 0], sizes = [7, 16, 128], strides = [1, 1, 1]} : vector<8x16x128xf32> to vector<7x16x128xf32>
    %50 = vector.extract_strided_slice %1 {offsets = [0, 0, 0], sizes = [7, 16, 128], strides = [1, 1, 1]} : vector<8x16x128xf32> to vector<7x16x128xf32>
    %51 = arith.subf %49, %50 : vector<7x16x128xf32>
    %52 = vector.extract_strided_slice %3 {offsets = [1, 0, 0], sizes = [7, 16, 128], strides = [1, 1, 1]} : vector<8x16x128xf32> to vector<7x16x128xf32>
    %53 = vector.extract_strided_slice %3 {offsets = [0, 0, 0], sizes = [7, 16, 128], strides = [1, 1, 1]} : vector<8x16x128xf32> to vector<7x16x128xf32>
    %54 = arith.subf %52, %53 : vector<7x16x128xf32>
    %55 = arith.mulf %51, %54 : vector<7x16x128xf32>
    %cst_12 = arith.constant dense<0.000000e+00> : vector<16x128xf32>
    %56 = vector.multi_reduction <add>, %55, %cst_12 [0] : vector<7x16x128xf32> to vector<16x128xf32>
    %57 = arith.mulf %54, %54 : vector<7x16x128xf32>
    %cst_13 = arith.constant dense<0.000000e+00> : vector<16x128xf32>
    %58 = vector.multi_reduction <add>, %57, %cst_13 [0] : vector<7x16x128xf32> to vector<16x128xf32>
    %cst_14 = arith.constant dense<0.000000e+00> : vector<128xf32>
    %59 = vector.multi_reduction <add>, %56, %cst_14 [0] : vector<16x128xf32> to vector<128xf32>
    %60 = vector.shape_cast %59 : vector<128xf32> to vector<1x128xf32>
    %c0_15 = arith.constant 0 : index
    %c0_16 = arith.constant 0 : index
    %c0_17 = arith.constant 0 : index
    %61 = vector.load %arg3[%c0_15, %c0_16, %c0_17] : memref<1x27x128xf32, #tpu.memory_space<vmem>>, vector<1x1x128xf32>
    %62 = vector.shape_cast %61 : vector<1x1x128xf32> to vector<1x128xf32>
    %63 = vector.shape_cast %60 : vector<1x128xf32> to vector<1x1x128xf32>
    tpu.vector_store %arg3[%c0_15, %c0_16, %c0_17], %63 {strides = array<i32>} : memref<1x27x128xf32, #tpu.memory_space<vmem>>, vector<1x1x128xf32>,
    %cst_18 = arith.constant dense<0.000000e+00> : vector<128xf32>
    %64 = vector.multi_reduction <add>, %58, %cst_18 [0] : vector<16x128xf32> to vector<128xf32>
    %65 = vector.shape_cast %64 : vector<128xf32> to vector<1x128xf32>
    %c0_19 = arith.constant 0 : index
    %c13 = arith.constant 13 : index
    %c0_20 = arith.constant 0 : index
    %66 = vector.load %arg3[%c0_19, %c13, %c0_20] : memref<1x27x128xf32, #tpu.memory_space<vmem>>, vector<1x1x128xf32>
    %67 = vector.shape_cast %66 : vector<1x1x128xf32> to vector<1x128xf32>
    %68 = vector.shape_cast %65 : vector<1x128xf32> to vector<1x1x128xf32>
    tpu.vector_store %arg3[%c0_19, %c13, %c0_20], %68 {strides = array<i32>} : memref<1x27x128xf32, #tpu.memory_space<vmem>>, vector<1x1x128xf32>,
    %69 = arith.subf %22, %1 : vector<8x16x128xf32>
    %70 = arith.subf %31, %3 : vector<8x16x128xf32>
    %71 = arith.mulf %69, %70 : vector<8x16x128xf32>
    %cst_21 = arith.constant dense<0.000000e+00> : vector<16x128xf32>
    %72 = vector.multi_reduction <add>, %71, %cst_21 [0] : vector<8x16x128xf32> to vector<16x128xf32>
    %73 = arith.mulf %70, %70 : vector<8x16x128xf32>
    %cst_22 = arith.constant dense<0.000000e+00> : vector<16x128xf32>
    %74 = vector.multi_reduction <add>, %73, %cst_22 [0] : vector<8x16x128xf32> to vector<16x128xf32>
    %75 = arith.mulf %72, %47 : vector<16x128xf32>
    %76 = arith.mulf %74, %47 : vector<16x128xf32>
    %cst_23 = arith.constant dense<0.000000e+00> : vector<128xf32>
    %77 = vector.multi_reduction <add>, %75, %cst_23 [0] : vector<16x128xf32> to vector<128xf32>
    %78 = vector.shape_cast %77 : vector<128xf32> to vector<1x128xf32>
    %c0_24 = arith.constant 0 : index
    %c1 = arith.constant 1 : index
    %c0_25 = arith.constant 0 : index
    %79 = vector.load %arg3[%c0_24, %c1, %c0_25] : memref<1x27x128xf32, #tpu.memory_space<vmem>>, vector<1x1x128xf32>
    %80 = vector.shape_cast %79 : vector<1x1x128xf32> to vector<1x128xf32>
    %81 = vector.shape_cast %78 : vector<1x128xf32> to vector<1x1x128xf32>
    tpu.vector_store %arg3[%c0_24, %c1, %c0_25], %81 {strides = array<i32>} : memref<1x27x128xf32, #tpu.memory_space<vmem>>, vector<1x1x128xf32>,
    %cst_26 = arith.constant dense<0.000000e+00> : vector<128xf32>
    %82 = vector.multi_reduction <add>, %76, %cst_26 [0] : vector<16x128xf32> to vector<128xf32>
    %83 = vector.shape_cast %82 : vector<128xf32> to vector<1x128xf32>
    %c0_27 = arith.constant 0 : index
    %c14 = arith.constant 14 : index
    %c0_28 = arith.constant 0 : index
    %84 = vector.load %arg3[%c0_27, %c14, %c0_28] : memref<1x27x128xf32, #tpu.memory_space<vmem>>, vector<1x1x128xf32>
    %85 = vector.shape_cast %84 : vector<1x1x128xf32> to vector<1x128xf32>
    %86 = vector.shape_cast %83 : vector<1x128xf32> to vector<1x1x128xf32>
    tpu.vector_store %arg3[%c0_27, %c14, %c0_28], %86 {strides = array<i32>} : memref<1x27x128xf32, #tpu.memory_space<vmem>>, vector<1x1x128xf32>,
    %87 = arith.subf %25, %1 : vector<8x16x128xf32>
    %88 = arith.subf %34, %3 : vector<8x16x128xf32>
    %89 = arith.mulf %87, %88 : vector<8x16x128xf32>
    %cst_29 = arith.constant dense<0.000000e+00> : vector<16x128xf32>
    %90 = vector.multi_reduction <add>, %89, %cst_29 [0] : vector<8x16x128xf32> to vector<16x128xf32>
    %91 = arith.mulf %88, %88 : vector<8x16x128xf32>
    %cst_30 = arith.constant dense<0.000000e+00> : vector<16x128xf32>
    %92 = vector.multi_reduction <add>, %91, %cst_30 [0] : vector<8x16x128xf32> to vector<16x128xf32>
    %93 = arith.mulf %90, %43 : vector<16x128xf32>
    %94 = arith.mulf %92, %43 : vector<16x128xf32>
    %cst_31 = arith.constant dense<0.000000e+00> : vector<128xf32>
    %95 = vector.multi_reduction <add>, %93, %cst_31 [0] : vector<16x128xf32> to vector<128xf32>
    %96 = vector.shape_cast %95 : vector<128xf32> to vector<1x128xf32>
    %c0_32 = arith.constant 0 : index
    %c2 = arith.constant 2 : index
    %c0_33 = arith.constant 0 : index
    %97 = vector.load %arg3[%c0_32, %c2, %c0_33] : memref<1x27x128xf32, #tpu.memory_space<vmem>>, vector<1x1x128xf32>
    %98 = vector.shape_cast %97 : vector<1x1x128xf32> to vector<1x128xf32>
    %99 = vector.shape_cast %96 : vector<1x128xf32> to vector<1x1x128xf32>
    tpu.vector_store %arg3[%c0_32, %c2, %c0_33], %99 {strides = array<i32>} : memref<1x27x128xf32, #tpu.memory_space<vmem>>, vector<1x1x128xf32>,
    %cst_34 = arith.constant dense<0.000000e+00> : vector<128xf32>
    %100 = vector.multi_reduction <add>, %94, %cst_34 [0] : vector<16x128xf32> to vector<128xf32>
    %101 = vector.shape_cast %100 : vector<128xf32> to vector<1x128xf32>
    %c0_35 = arith.constant 0 : index
    %c15 = arith.constant 15 : index
    %c0_36 = arith.constant 0 : index
    %102 = vector.load %arg3[%c0_35, %c15, %c0_36] : memref<1x27x128xf32, #tpu.memory_space<vmem>>, vector<1x1x128xf32>
    %103 = vector.shape_cast %102 : vector<1x1x128xf32> to vector<1x128xf32>
    %104 = vector.shape_cast %101 : vector<1x128xf32> to vector<1x1x128xf32>
    tpu.vector_store %arg3[%c0_35, %c15, %c0_36], %104 {strides = array<i32>} : memref<1x27x128xf32, #tpu.memory_space<vmem>>, vector<1x1x128xf32>,
    %105 = vector.extract_strided_slice %22 {offsets = [1, 0, 0], sizes = [7, 16, 128], strides = [1, 1, 1]} : vector<8x16x128xf32> to vector<7x16x128xf32>
    %106 = vector.extract_strided_slice %1 {offsets = [0, 0, 0], sizes = [7, 16, 128], strides = [1, 1, 1]} : vector<8x16x128xf32> to vector<7x16x128xf32>
    %107 = arith.subf %105, %106 : vector<7x16x128xf32>
    %108 = vector.extract_strided_slice %31 {offsets = [1, 0, 0], sizes = [7, 16, 128], strides = [1, 1, 1]} : vector<8x16x128xf32> to vector<7x16x128xf32>
    %109 = vector.extract_strided_slice %3 {offsets = [0, 0, 0], sizes = [7, 16, 128], strides = [1, 1, 1]} : vector<8x16x128xf32> to vector<7x16x128xf32>
    %110 = arith.subf %108, %109 : vector<7x16x128xf32>
    %111 = arith.mulf %107, %110 : vector<7x16x128xf32>
    %cst_37 = arith.constant dense<0.000000e+00> : vector<16x128xf32>
    %112 = vector.multi_reduction <add>, %111, %cst_37 [0] : vector<7x16x128xf32> to vector<16x128xf32>
    %113 = arith.mulf %110, %110 : vector<7x16x128xf32>
    %cst_38 = arith.constant dense<0.000000e+00> : vector<16x128xf32>
    %114 = vector.multi_reduction <add>, %113, %cst_38 [0] : vector<7x16x128xf32> to vector<16x128xf32>
    %115 = arith.mulf %112, %47 : vector<16x128xf32>
    %116 = arith.mulf %114, %47 : vector<16x128xf32>
    %cst_39 = arith.constant dense<0.000000e+00> : vector<128xf32>
    %117 = vector.multi_reduction <add>, %115, %cst_39 [0] : vector<16x128xf32> to vector<128xf32>
    %118 = vector.shape_cast %117 : vector<128xf32> to vector<1x128xf32>
    %c0_40 = arith.constant 0 : index
    %c3 = arith.constant 3 : index
    %c0_41 = arith.constant 0 : index
    %119 = vector.load %arg3[%c0_40, %c3, %c0_41] : memref<1x27x128xf32, #tpu.memory_space<vmem>>, vector<1x1x128xf32>
    %120 = vector.shape_cast %119 : vector<1x1x128xf32> to vector<1x128xf32>
    %121 = vector.shape_cast %118 : vector<1x128xf32> to vector<1x1x128xf32>
    tpu.vector_store %arg3[%c0_40, %c3, %c0_41], %121 {strides = array<i32>} : memref<1x27x128xf32, #tpu.memory_space<vmem>>, vector<1x1x128xf32>,
    %cst_42 = arith.constant dense<0.000000e+00> : vector<128xf32>
    %122 = vector.multi_reduction <add>, %116, %cst_42 [0] : vector<16x128xf32> to vector<128xf32>
    %123 = vector.shape_cast %122 : vector<128xf32> to vector<1x128xf32>
    %c0_43 = arith.constant 0 : index
    %c16 = arith.constant 16 : index
    %c0_44 = arith.constant 0 : index
    %124 = vector.load %arg3[%c0_43, %c16, %c0_44] : memref<1x27x128xf32, #tpu.memory_space<vmem>>, vector<1x1x128xf32>
    %125 = vector.shape_cast %124 : vector<1x1x128xf32> to vector<1x128xf32>
    %126 = vector.shape_cast %123 : vector<1x128xf32> to vector<1x1x128xf32>
    tpu.vector_store %arg3[%c0_43, %c16, %c0_44], %126 {strides = array<i32>} : memref<1x27x128xf32, #tpu.memory_space<vmem>>, vector<1x1x128xf32>,
    %127 = vector.extract_strided_slice %1 {offsets = [1, 0, 0], sizes = [7, 16, 128], strides = [1, 1, 1]} : vector<8x16x128xf32> to vector<7x16x128xf32>
    %128 = vector.extract_strided_slice %22 {offsets = [0, 0, 0], sizes = [7, 16, 128], strides = [1, 1, 1]} : vector<8x16x128xf32> to vector<7x16x128xf32>
    %129 = arith.subf %127, %128 : vector<7x16x128xf32>
    %130 = vector.extract_strided_slice %3 {offsets = [1, 0, 0], sizes = [7, 16, 128], strides = [1, 1, 1]} : vector<8x16x128xf32> to vector<7x16x128xf32>
    %131 = vector.extract_strided_slice %31 {offsets = [0, 0, 0], sizes = [7, 16, 128], strides = [1, 1, 1]} : vector<8x16x128xf32> to vector<7x16x128xf32>
    %132 = arith.subf %130, %131 : vector<7x16x128xf32>
    %133 = arith.mulf %129, %132 : vector<7x16x128xf32>
    %cst_45 = arith.constant dense<0.000000e+00> : vector<16x128xf32>
    %134 = vector.multi_reduction <add>, %133, %cst_45 [0] : vector<7x16x128xf32> to vector<16x128xf32>
    %135 = arith.mulf %132, %132 : vector<7x16x128xf32>
    %cst_46 = arith.constant dense<0.000000e+00> : vector<16x128xf32>
    %136 = vector.multi_reduction <add>, %135, %cst_46 [0] : vector<7x16x128xf32> to vector<16x128xf32>
    %137 = arith.mulf %134, %47 : vector<16x128xf32>
    %138 = arith.mulf %136, %47 : vector<16x128xf32>
    %cst_47 = arith.constant dense<0.000000e+00> : vector<128xf32>
    %139 = vector.multi_reduction <add>, %137, %cst_47 [0] : vector<16x128xf32> to vector<128xf32>
    %140 = vector.shape_cast %139 : vector<128xf32> to vector<1x128xf32>
    %c0_48 = arith.constant 0 : index
    %c4 = arith.constant 4 : index
    %c0_49 = arith.constant 0 : index
    %141 = vector.load %arg3[%c0_48, %c4, %c0_49] : memref<1x27x128xf32, #tpu.memory_space<vmem>>, vector<1x1x128xf32>
    %142 = vector.shape_cast %141 : vector<1x1x128xf32> to vector<1x128xf32>
    %143 = vector.shape_cast %140 : vector<1x128xf32> to vector<1x1x128xf32>
    tpu.vector_store %arg3[%c0_48, %c4, %c0_49], %143 {strides = array<i32>} : memref<1x27x128xf32, #tpu.memory_space<vmem>>, vector<1x1x128xf32>,
    %cst_50 = arith.constant dense<0.000000e+00> : vector<128xf32>
    %144 = vector.multi_reduction <add>, %138, %cst_50 [0] : vector<16x128xf32> to vector<128xf32>
    %145 = vector.shape_cast %144 : vector<128xf32> to vector<1x128xf32>
    %c0_51 = arith.constant 0 : index
    %c17 = arith.constant 17 : index
    %c0_52 = arith.constant 0 : index
    %146 = vector.load %arg3[%c0_51, %c17, %c0_52] : memref<1x27x128xf32, #tpu.memory_space<vmem>>, vector<1x1x128xf32>
    %147 = vector.shape_cast %146 : vector<1x1x128xf32> to vector<1x128xf32>
    %148 = vector.shape_cast %145 : vector<1x128xf32> to vector<1x1x128xf32>
    tpu.vector_store %arg3[%c0_51, %c17, %c0_52], %148 {strides = array<i32>} : memref<1x27x128xf32, #tpu.memory_space<vmem>>, vector<1x1x128xf32>,
    %149 = arith.subf %28, %1 : vector<8x16x128xf32>
    %150 = arith.subf %37, %3 : vector<8x16x128xf32>
    %151 = arith.mulf %149, %150 : vector<8x16x128xf32>
    %cst_53 = arith.constant dense<0.000000e+00> : vector<16x128xf32>
    %152 = vector.multi_reduction <add>, %151, %cst_53 [0] : vector<8x16x128xf32> to vector<16x128xf32>
    %153 = arith.mulf %150, %150 : vector<8x16x128xf32>
    %cst_54 = arith.constant dense<0.000000e+00> : vector<16x128xf32>
    %154 = vector.multi_reduction <add>, %153, %cst_54 [0] : vector<8x16x128xf32> to vector<16x128xf32>
    %155 = arith.mulf %152, %48 : vector<16x128xf32>
    %156 = arith.mulf %154, %48 : vector<16x128xf32>
    %cst_55 = arith.constant dense<0.000000e+00> : vector<128xf32>
    %157 = vector.multi_reduction <add>, %155, %cst_55 [0] : vector<16x128xf32> to vector<128xf32>
    %158 = vector.shape_cast %157 : vector<128xf32> to vector<1x128xf32>
    %c0_56 = arith.constant 0 : index
    %c5 = arith.constant 5 : index
    %c0_57 = arith.constant 0 : index
    %159 = vector.load %arg3[%c0_56, %c5, %c0_57] : memref<1x27x128xf32, #tpu.memory_space<vmem>>, vector<1x1x128xf32>
    %160 = vector.shape_cast %159 : vector<1x1x128xf32> to vector<1x128xf32>
    %161 = vector.shape_cast %158 : vector<1x128xf32> to vector<1x1x128xf32>
    tpu.vector_store %arg3[%c0_56, %c5, %c0_57], %161 {strides = array<i32>} : memref<1x27x128xf32, #tpu.memory_space<vmem>>, vector<1x1x128xf32>,
    %cst_58 = arith.constant dense<0.000000e+00> : vector<128xf32>
    %162 = vector.multi_reduction <add>, %156, %cst_58 [0] : vector<16x128xf32> to vector<128xf32>
    %163 = vector.shape_cast %162 : vector<128xf32> to vector<1x128xf32>
    %c0_59 = arith.constant 0 : index
    %c18 = arith.constant 18 : index
    %c0_60 = arith.constant 0 : index
    %164 = vector.load %arg3[%c0_59, %c18, %c0_60] : memref<1x27x128xf32, #tpu.memory_space<vmem>>, vector<1x1x128xf32>
    %165 = vector.shape_cast %164 : vector<1x1x128xf32> to vector<1x128xf32>
    %166 = vector.shape_cast %163 : vector<1x128xf32> to vector<1x1x128xf32>
    tpu.vector_store %arg3[%c0_59, %c18, %c0_60], %166 {strides = array<i32>} : memref<1x27x128xf32, #tpu.memory_space<vmem>>, vector<1x1x128xf32>,
    %167 = arith.subf %22, %25 : vector<8x16x128xf32>
    %168 = arith.subf %31, %34 : vector<8x16x128xf32>
    %169 = arith.mulf %167, %168 : vector<8x16x128xf32>
    %cst_61 = arith.constant dense<0.000000e+00> : vector<16x128xf32>
    %170 = vector.multi_reduction <add>, %169, %cst_61 [0] : vector<8x16x128xf32> to vector<16x128xf32>
    %171 = arith.mulf %168, %168 : vector<8x16x128xf32>
    %cst_62 = arith.constant dense<0.000000e+00> : vector<16x128xf32>
    %172 = vector.multi_reduction <add>, %171, %cst_62 [0] : vector<8x16x128xf32> to vector<16x128xf32>
    %173 = arith.mulf %170, %48 : vector<16x128xf32>
    %174 = arith.mulf %172, %48 : vector<16x128xf32>
    %cst_63 = arith.constant dense<0.000000e+00> : vector<128xf32>
    %175 = vector.multi_reduction <add>, %173, %cst_63 [0] : vector<16x128xf32> to vector<128xf32>
    %176 = vector.shape_cast %175 : vector<128xf32> to vector<1x128xf32>
    %c0_64 = arith.constant 0 : index
    %c6 = arith.constant 6 : index
    %c0_65 = arith.constant 0 : index
    %177 = vector.load %arg3[%c0_64, %c6, %c0_65] : memref<1x27x128xf32, #tpu.memory_space<vmem>>, vector<1x1x128xf32>
    %178 = vector.shape_cast %177 : vector<1x1x128xf32> to vector<1x128xf32>
    %179 = vector.shape_cast %176 : vector<1x128xf32> to vector<1x1x128xf32>
    tpu.vector_store %arg3[%c0_64, %c6, %c0_65], %179 {strides = array<i32>} : memref<1x27x128xf32, #tpu.memory_space<vmem>>, vector<1x1x128xf32>,
    %cst_66 = arith.constant dense<0.000000e+00> : vector<128xf32>
    %180 = vector.multi_reduction <add>, %174, %cst_66 [0] : vector<16x128xf32> to vector<128xf32>
    %181 = vector.shape_cast %180 : vector<128xf32> to vector<1x128xf32>
    %c0_67 = arith.constant 0 : index
    %c19 = arith.constant 19 : index
    %c0_68 = arith.constant 0 : index
    %182 = vector.load %arg3[%c0_67, %c19, %c0_68] : memref<1x27x128xf32, #tpu.memory_space<vmem>>, vector<1x1x128xf32>
    %183 = vector.shape_cast %182 : vector<1x1x128xf32> to vector<1x128xf32>
    %184 = vector.shape_cast %181 : vector<1x128xf32> to vector<1x1x128xf32>
    tpu.vector_store %arg3[%c0_67, %c19, %c0_68], %184 {strides = array<i32>} : memref<1x27x128xf32, #tpu.memory_space<vmem>>, vector<1x1x128xf32>,
    %185 = vector.extract_strided_slice %1 {offsets = [1, 0, 0], sizes = [7, 16, 128], strides = [1, 1, 1]} : vector<8x16x128xf32> to vector<7x16x128xf32>
    %186 = vector.extract_strided_slice %25 {offsets = [0, 0, 0], sizes = [7, 16, 128], strides = [1, 1, 1]} : vector<8x16x128xf32> to vector<7x16x128xf32>
    %187 = arith.subf %185, %186 : vector<7x16x128xf32>
    %188 = vector.extract_strided_slice %3 {offsets = [1, 0, 0], sizes = [7, 16, 128], strides = [1, 1, 1]} : vector<8x16x128xf32> to vector<7x16x128xf32>
    %189 = vector.extract_strided_slice %34 {offsets = [0, 0, 0], sizes = [7, 16, 128], strides = [1, 1, 1]} : vector<8x16x128xf32> to vector<7x16x128xf32>
    %190 = arith.subf %188, %189 : vector<7x16x128xf32>
    %191 = arith.mulf %187, %190 : vector<7x16x128xf32>
    %cst_69 = arith.constant dense<0.000000e+00> : vector<16x128xf32>
    %192 = vector.multi_reduction <add>, %191, %cst_69 [0] : vector<7x16x128xf32> to vector<16x128xf32>
    %193 = arith.mulf %190, %190 : vector<7x16x128xf32>
    %cst_70 = arith.constant dense<0.000000e+00> : vector<16x128xf32>
    %194 = vector.multi_reduction <add>, %193, %cst_70 [0] : vector<7x16x128xf32> to vector<16x128xf32>
    %195 = arith.mulf %192, %43 : vector<16x128xf32>
    %196 = arith.mulf %194, %43 : vector<16x128xf32>
    %cst_71 = arith.constant dense<0.000000e+00> : vector<128xf32>
    %197 = vector.multi_reduction <add>, %195, %cst_71 [0] : vector<16x128xf32> to vector<128xf32>
    %198 = vector.shape_cast %197 : vector<128xf32> to vector<1x128xf32>
    %c0_72 = arith.constant 0 : index
    %c7 = arith.constant 7 : index
    %c0_73 = arith.constant 0 : index
    %199 = vector.load %arg3[%c0_72, %c7, %c0_73] : memref<1x27x128xf32, #tpu.memory_space<vmem>>, vector<1x1x128xf32>
    %200 = vector.shape_cast %199 : vector<1x1x128xf32> to vector<1x128xf32>
    %201 = vector.shape_cast %198 : vector<1x128xf32> to vector<1x1x128xf32>
    tpu.vector_store %arg3[%c0_72, %c7, %c0_73], %201 {strides = array<i32>} : memref<1x27x128xf32, #tpu.memory_space<vmem>>, vector<1x1x128xf32>,
    %cst_74 = arith.constant dense<0.000000e+00> : vector<128xf32>
    %202 = vector.multi_reduction <add>, %196, %cst_74 [0] : vector<16x128xf32> to vector<128xf32>
    %203 = vector.shape_cast %202 : vector<128xf32> to vector<1x128xf32>
    %c0_75 = arith.constant 0 : index
    %c20 = arith.constant 20 : index
    %c0_76 = arith.constant 0 : index
    %204 = vector.load %arg3[%c0_75, %c20, %c0_76] : memref<1x27x128xf32, #tpu.memory_space<vmem>>, vector<1x1x128xf32>
    %205 = vector.shape_cast %204 : vector<1x1x128xf32> to vector<1x128xf32>
    %206 = vector.shape_cast %203 : vector<1x128xf32> to vector<1x1x128xf32>
    tpu.vector_store %arg3[%c0_75, %c20, %c0_76], %206 {strides = array<i32>} : memref<1x27x128xf32, #tpu.memory_space<vmem>>, vector<1x1x128xf32>,
    %207 = vector.extract_strided_slice %25 {offsets = [1, 0, 0], sizes = [7, 16, 128], strides = [1, 1, 1]} : vector<8x16x128xf32> to vector<7x16x128xf32>
    %208 = vector.extract_strided_slice %1 {offsets = [0, 0, 0], sizes = [7, 16, 128], strides = [1, 1, 1]} : vector<8x16x128xf32> to vector<7x16x128xf32>
    %209 = arith.subf %207, %208 : vector<7x16x128xf32>
    %210 = vector.extract_strided_slice %34 {offsets = [1, 0, 0], sizes = [7, 16, 128], strides = [1, 1, 1]} : vector<8x16x128xf32> to vector<7x16x128xf32>
    %211 = vector.extract_strided_slice %3 {offsets = [0, 0, 0], sizes = [7, 16, 128], strides = [1, 1, 1]} : vector<8x16x128xf32> to vector<7x16x128xf32>
    %212 = arith.subf %210, %211 : vector<7x16x128xf32>
    %213 = arith.mulf %209, %212 : vector<7x16x128xf32>
    %cst_77 = arith.constant dense<0.000000e+00> : vector<16x128xf32>
    %214 = vector.multi_reduction <add>, %213, %cst_77 [0] : vector<7x16x128xf32> to vector<16x128xf32>
    %215 = arith.mulf %212, %212 : vector<7x16x128xf32>
    %cst_78 = arith.constant dense<0.000000e+00> : vector<16x128xf32>
    %216 = vector.multi_reduction <add>, %215, %cst_78 [0] : vector<7x16x128xf32> to vector<16x128xf32>
    %217 = arith.mulf %214, %43 : vector<16x128xf32>
    %218 = arith.mulf %216, %43 : vector<16x128xf32>
    %cst_79 = arith.constant dense<0.000000e+00> : vector<128xf32>
    %219 = vector.multi_reduction <add>, %217, %cst_79 [0] : vector<16x128xf32> to vector<128xf32>
    %220 = vector.shape_cast %219 : vector<128xf32> to vector<1x128xf32>
    %c0_80 = arith.constant 0 : index
    %c8 = arith.constant 8 : index
    %c0_81 = arith.constant 0 : index
    %221 = vector.load %arg3[%c0_80, %c8, %c0_81] : memref<1x27x128xf32, #tpu.memory_space<vmem>>, vector<1x1x128xf32>
    %222 = vector.shape_cast %221 : vector<1x1x128xf32> to vector<1x128xf32>
    %223 = vector.shape_cast %220 : vector<1x128xf32> to vector<1x1x128xf32>
    tpu.vector_store %arg3[%c0_80, %c8, %c0_81], %223 {strides = array<i32>} : memref<1x27x128xf32, #tpu.memory_space<vmem>>, vector<1x1x128xf32>,
    %cst_82 = arith.constant dense<0.000000e+00> : vector<128xf32>
    %224 = vector.multi_reduction <add>, %218, %cst_82 [0] : vector<16x128xf32> to vector<128xf32>
    %225 = vector.shape_cast %224 : vector<128xf32> to vector<1x128xf32>
    %c0_83 = arith.constant 0 : index
    %c21 = arith.constant 21 : index
    %c0_84 = arith.constant 0 : index
    %226 = vector.load %arg3[%c0_83, %c21, %c0_84] : memref<1x27x128xf32, #tpu.memory_space<vmem>>, vector<1x1x128xf32>
    %227 = vector.shape_cast %226 : vector<1x1x128xf32> to vector<1x128xf32>
    %228 = vector.shape_cast %225 : vector<1x128xf32> to vector<1x1x128xf32>
    tpu.vector_store %arg3[%c0_83, %c21, %c0_84], %228 {strides = array<i32>} : memref<1x27x128xf32, #tpu.memory_space<vmem>>, vector<1x1x128xf32>,
    %229 = vector.extract_strided_slice %1 {offsets = [1, 0, 0], sizes = [7, 16, 128], strides = [1, 1, 1]} : vector<8x16x128xf32> to vector<7x16x128xf32>
    %230 = vector.extract_strided_slice %28 {offsets = [0, 0, 0], sizes = [7, 16, 128], strides = [1, 1, 1]} : vector<8x16x128xf32> to vector<7x16x128xf32>
    %231 = arith.subf %229, %230 : vector<7x16x128xf32>
    %232 = vector.extract_strided_slice %3 {offsets = [1, 0, 0], sizes = [7, 16, 128], strides = [1, 1, 1]} : vector<8x16x128xf32> to vector<7x16x128xf32>
    %233 = vector.extract_strided_slice %37 {offsets = [0, 0, 0], sizes = [7, 16, 128], strides = [1, 1, 1]} : vector<8x16x128xf32> to vector<7x16x128xf32>
    %234 = arith.subf %232, %233 : vector<7x16x128xf32>
    %235 = arith.mulf %231, %234 : vector<7x16x128xf32>
    %cst_85 = arith.constant dense<0.000000e+00> : vector<16x128xf32>
    %236 = vector.multi_reduction <add>, %235, %cst_85 [0] : vector<7x16x128xf32> to vector<16x128xf32>
    %237 = arith.mulf %234, %234 : vector<7x16x128xf32>
    %cst_86 = arith.constant dense<0.000000e+00> : vector<16x128xf32>
    %238 = vector.multi_reduction <add>, %237, %cst_86 [0] : vector<7x16x128xf32> to vector<16x128xf32>
    %239 = arith.mulf %236, %48 : vector<16x128xf32>
    %240 = arith.mulf %238, %48 : vector<16x128xf32>
    %cst_87 = arith.constant dense<0.000000e+00> : vector<128xf32>
    %241 = vector.multi_reduction <add>, %239, %cst_87 [0] : vector<16x128xf32> to vector<128xf32>
    %242 = vector.shape_cast %241 : vector<128xf32> to vector<1x128xf32>
    %c0_88 = arith.constant 0 : index
    %c9 = arith.constant 9 : index
    %c0_89 = arith.constant 0 : index
    %243 = vector.load %arg3[%c0_88, %c9, %c0_89] : memref<1x27x128xf32, #tpu.memory_space<vmem>>, vector<1x1x128xf32>
    %244 = vector.shape_cast %243 : vector<1x1x128xf32> to vector<1x128xf32>
    %245 = vector.shape_cast %242 : vector<1x128xf32> to vector<1x1x128xf32>
    tpu.vector_store %arg3[%c0_88, %c9, %c0_89], %245 {strides = array<i32>} : memref<1x27x128xf32, #tpu.memory_space<vmem>>, vector<1x1x128xf32>,
    %cst_90 = arith.constant dense<0.000000e+00> : vector<128xf32>
    %246 = vector.multi_reduction <add>, %240, %cst_90 [0] : vector<16x128xf32> to vector<128xf32>
    %247 = vector.shape_cast %246 : vector<128xf32> to vector<1x128xf32>
    %c0_91 = arith.constant 0 : index
    %c22 = arith.constant 22 : index
    %c0_92 = arith.constant 0 : index
    %248 = vector.load %arg3[%c0_91, %c22, %c0_92] : memref<1x27x128xf32, #tpu.memory_space<vmem>>, vector<1x1x128xf32>
    %249 = vector.shape_cast %248 : vector<1x1x128xf32> to vector<1x128xf32>
    %250 = vector.shape_cast %247 : vector<1x128xf32> to vector<1x1x128xf32>
    tpu.vector_store %arg3[%c0_91, %c22, %c0_92], %250 {strides = array<i32>} : memref<1x27x128xf32, #tpu.memory_space<vmem>>, vector<1x1x128xf32>,
    %251 = vector.extract_strided_slice %22 {offsets = [1, 0, 0], sizes = [7, 16, 128], strides = [1, 1, 1]} : vector<8x16x128xf32> to vector<7x16x128xf32>
    %252 = vector.extract_strided_slice %25 {offsets = [0, 0, 0], sizes = [7, 16, 128], strides = [1, 1, 1]} : vector<8x16x128xf32> to vector<7x16x128xf32>
    %253 = arith.subf %251, %252 : vector<7x16x128xf32>
    %254 = vector.extract_strided_slice %31 {offsets = [1, 0, 0], sizes = [7, 16, 128], strides = [1, 1, 1]} : vector<8x16x128xf32> to vector<7x16x128xf32>
    %255 = vector.extract_strided_slice %34 {offsets = [0, 0, 0], sizes = [7, 16, 128], strides = [1, 1, 1]} : vector<8x16x128xf32> to vector<7x16x128xf32>
    %256 = arith.subf %254, %255 : vector<7x16x128xf32>
    %257 = arith.mulf %253, %256 : vector<7x16x128xf32>
    %cst_93 = arith.constant dense<0.000000e+00> : vector<16x128xf32>
    %258 = vector.multi_reduction <add>, %257, %cst_93 [0] : vector<7x16x128xf32> to vector<16x128xf32>
    %259 = arith.mulf %256, %256 : vector<7x16x128xf32>
    %cst_94 = arith.constant dense<0.000000e+00> : vector<16x128xf32>
    %260 = vector.multi_reduction <add>, %259, %cst_94 [0] : vector<7x16x128xf32> to vector<16x128xf32>
    %261 = arith.mulf %258, %48 : vector<16x128xf32>
    %262 = arith.mulf %260, %48 : vector<16x128xf32>
    %cst_95 = arith.constant dense<0.000000e+00> : vector<128xf32>
    %263 = vector.multi_reduction <add>, %261, %cst_95 [0] : vector<16x128xf32> to vector<128xf32>
    %264 = vector.shape_cast %263 : vector<128xf32> to vector<1x128xf32>
    %c0_96 = arith.constant 0 : index
    %c10 = arith.constant 10 : index
    %c0_97 = arith.constant 0 : index
    %265 = vector.load %arg3[%c0_96, %c10, %c0_97] : memref<1x27x128xf32, #tpu.memory_space<vmem>>, vector<1x1x128xf32>
    %266 = vector.shape_cast %265 : vector<1x1x128xf32> to vector<1x128xf32>
    %267 = vector.shape_cast %264 : vector<1x128xf32> to vector<1x1x128xf32>
    tpu.vector_store %arg3[%c0_96, %c10, %c0_97], %267 {strides = array<i32>} : memref<1x27x128xf32, #tpu.memory_space<vmem>>, vector<1x1x128xf32>,
    %cst_98 = arith.constant dense<0.000000e+00> : vector<128xf32>
    %268 = vector.multi_reduction <add>, %262, %cst_98 [0] : vector<16x128xf32> to vector<128xf32>
    %269 = vector.shape_cast %268 : vector<128xf32> to vector<1x128xf32>
    %c0_99 = arith.constant 0 : index
    %c23 = arith.constant 23 : index
    %c0_100 = arith.constant 0 : index
    %270 = vector.load %arg3[%c0_99, %c23, %c0_100] : memref<1x27x128xf32, #tpu.memory_space<vmem>>, vector<1x1x128xf32>
    %271 = vector.shape_cast %270 : vector<1x1x128xf32> to vector<1x128xf32>
    %272 = vector.shape_cast %269 : vector<1x128xf32> to vector<1x1x128xf32>
    tpu.vector_store %arg3[%c0_99, %c23, %c0_100], %272 {strides = array<i32>} : memref<1x27x128xf32, #tpu.memory_space<vmem>>, vector<1x1x128xf32>,
    %273 = vector.extract_strided_slice %1 {offsets = [0, 0, 0], sizes = [7, 16, 128], strides = [1, 1, 1]} : vector<8x16x128xf32> to vector<7x16x128xf32>
    %274 = vector.extract_strided_slice %28 {offsets = [1, 0, 0], sizes = [7, 16, 128], strides = [1, 1, 1]} : vector<8x16x128xf32> to vector<7x16x128xf32>
    %275 = arith.subf %273, %274 : vector<7x16x128xf32>
    %276 = vector.extract_strided_slice %3 {offsets = [0, 0, 0], sizes = [7, 16, 128], strides = [1, 1, 1]} : vector<8x16x128xf32> to vector<7x16x128xf32>
    %277 = vector.extract_strided_slice %37 {offsets = [1, 0, 0], sizes = [7, 16, 128], strides = [1, 1, 1]} : vector<8x16x128xf32> to vector<7x16x128xf32>
    %278 = arith.subf %276, %277 : vector<7x16x128xf32>
    %279 = arith.mulf %275, %278 : vector<7x16x128xf32>
    %cst_101 = arith.constant dense<0.000000e+00> : vector<16x128xf32>
    %280 = vector.multi_reduction <add>, %279, %cst_101 [0] : vector<7x16x128xf32> to vector<16x128xf32>
    %281 = arith.mulf %278, %278 : vector<7x16x128xf32>
    %cst_102 = arith.constant dense<0.000000e+00> : vector<16x128xf32>
    %282 = vector.multi_reduction <add>, %281, %cst_102 [0] : vector<7x16x128xf32> to vector<16x128xf32>
    %283 = arith.mulf %280, %48 : vector<16x128xf32>
    %284 = arith.mulf %282, %48 : vector<16x128xf32>
    %cst_103 = arith.constant dense<0.000000e+00> : vector<128xf32>
    %285 = vector.multi_reduction <add>, %283, %cst_103 [0] : vector<16x128xf32> to vector<128xf32>
    %286 = vector.shape_cast %285 : vector<128xf32> to vector<1x128xf32>
    %c0_104 = arith.constant 0 : index
    %c11 = arith.constant 11 : index
    %c0_105 = arith.constant 0 : index
    %287 = vector.load %arg3[%c0_104, %c11, %c0_105] : memref<1x27x128xf32, #tpu.memory_space<vmem>>, vector<1x1x128xf32>
    %288 = vector.shape_cast %287 : vector<1x1x128xf32> to vector<1x128xf32>
    %289 = vector.shape_cast %286 : vector<1x128xf32> to vector<1x1x128xf32>
    tpu.vector_store %arg3[%c0_104, %c11, %c0_105], %289 {strides = array<i32>} : memref<1x27x128xf32, #tpu.memory_space<vmem>>, vector<1x1x128xf32>,
    %cst_106 = arith.constant dense<0.000000e+00> : vector<128xf32>
    %290 = vector.multi_reduction <add>, %284, %cst_106 [0] : vector<16x128xf32> to vector<128xf32>
    %291 = vector.shape_cast %290 : vector<128xf32> to vector<1x128xf32>
    %c0_107 = arith.constant 0 : index
    %c24 = arith.constant 24 : index
    %c0_108 = arith.constant 0 : index
    %292 = vector.load %arg3[%c0_107, %c24, %c0_108] : memref<1x27x128xf32, #tpu.memory_space<vmem>>, vector<1x1x128xf32>
    %293 = vector.shape_cast %292 : vector<1x1x128xf32> to vector<1x128xf32>
    %294 = vector.shape_cast %291 : vector<1x128xf32> to vector<1x1x128xf32>
    tpu.vector_store %arg3[%c0_107, %c24, %c0_108], %294 {strides = array<i32>} : memref<1x27x128xf32, #tpu.memory_space<vmem>>, vector<1x1x128xf32>,
    %295 = vector.extract_strided_slice %22 {offsets = [0, 0, 0], sizes = [7, 16, 128], strides = [1, 1, 1]} : vector<8x16x128xf32> to vector<7x16x128xf32>
    %296 = vector.extract_strided_slice %25 {offsets = [1, 0, 0], sizes = [7, 16, 128], strides = [1, 1, 1]} : vector<8x16x128xf32> to vector<7x16x128xf32>
    %297 = arith.subf %295, %296 : vector<7x16x128xf32>
    %298 = vector.extract_strided_slice %31 {offsets = [0, 0, 0], sizes = [7, 16, 128], strides = [1, 1, 1]} : vector<8x16x128xf32> to vector<7x16x128xf32>
    %299 = vector.extract_strided_slice %34 {offsets = [1, 0, 0], sizes = [7, 16, 128], strides = [1, 1, 1]} : vector<8x16x128xf32> to vector<7x16x128xf32>
    %300 = arith.subf %298, %299 : vector<7x16x128xf32>
    %301 = arith.mulf %297, %300 : vector<7x16x128xf32>
    %cst_109 = arith.constant dense<0.000000e+00> : vector<16x128xf32>
    %302 = vector.multi_reduction <add>, %301, %cst_109 [0] : vector<7x16x128xf32> to vector<16x128xf32>
    %303 = arith.mulf %300, %300 : vector<7x16x128xf32>
    %cst_110 = arith.constant dense<0.000000e+00> : vector<16x128xf32>
    %304 = vector.multi_reduction <add>, %303, %cst_110 [0] : vector<7x16x128xf32> to vector<16x128xf32>
    %305 = arith.mulf %302, %48 : vector<16x128xf32>
    %306 = arith.mulf %304, %48 : vector<16x128xf32>
    %cst_111 = arith.constant dense<0.000000e+00> : vector<128xf32>
    %307 = vector.multi_reduction <add>, %305, %cst_111 [0] : vector<16x128xf32> to vector<128xf32>
    %308 = vector.shape_cast %307 : vector<128xf32> to vector<1x128xf32>
    %c0_112 = arith.constant 0 : index
    %c12 = arith.constant 12 : index
    %c0_113 = arith.constant 0 : index
    %309 = vector.load %arg3[%c0_112, %c12, %c0_113] : memref<1x27x128xf32, #tpu.memory_space<vmem>>, vector<1x1x128xf32>
    %310 = vector.shape_cast %309 : vector<1x1x128xf32> to vector<1x128xf32>
    %311 = vector.shape_cast %308 : vector<1x128xf32> to vector<1x1x128xf32>
    tpu.vector_store %arg3[%c0_112, %c12, %c0_113], %311 {strides = array<i32>} : memref<1x27x128xf32, #tpu.memory_space<vmem>>, vector<1x1x128xf32>,
    %cst_114 = arith.constant dense<0.000000e+00> : vector<128xf32>
    %312 = vector.multi_reduction <add>, %306, %cst_114 [0] : vector<16x128xf32> to vector<128xf32>
    %313 = vector.shape_cast %312 : vector<128xf32> to vector<1x128xf32>
    %c0_115 = arith.constant 0 : index
    %c25 = arith.constant 25 : index
    %c0_116 = arith.constant 0 : index
    %314 = vector.load %arg3[%c0_115, %c25, %c0_116] : memref<1x27x128xf32, #tpu.memory_space<vmem>>, vector<1x1x128xf32>
    %315 = vector.shape_cast %314 : vector<1x1x128xf32> to vector<1x128xf32>
    %316 = vector.shape_cast %313 : vector<1x128xf32> to vector<1x1x128xf32>
    tpu.vector_store %arg3[%c0_115, %c25, %c0_116], %316 {strides = array<i32>} : memref<1x27x128xf32, #tpu.memory_space<vmem>>, vector<1x1x128xf32>,
    %c0_117 = arith.constant 0 : index
    %c26 = arith.constant 26 : index
    %c0_118 = arith.constant 0 : index
    %317 = vector.load %arg3[%c0_117, %c26, %c0_118] : memref<1x27x128xf32, #tpu.memory_space<vmem>>, vector<1x1x128xf32>
    %318 = vector.shape_cast %317 : vector<1x1x128xf32> to vector<1x128xf32>
    %319 = vector.shape_cast %19 : vector<1x128xf32> to vector<1x1x128xf32>
    tpu.vector_store %arg3[%c0_117, %c26, %c0_118], %319 {strides = array<i32>} : memref<1x27x128xf32, #tpu.memory_space<vmem>>, vector<1x1x128xf32>,
    return
  }
  func.func @transform_0(%arg0: i32) -> (i32, i32, i32, i32) {
    %c0_i32 = arith.constant 0 : i32
    %c0_i32_0 = arith.constant 0 : i32
    %c0_i32_1 = arith.constant 0 : i32
    %c0_i32_2 = arith.constant 0 : i32
    return %arg0, %c0_i32, %c0_i32_0, %c0_i32_1 : i32, i32, i32, i32
  }
  func.func @transform_1(%arg0: i32) -> (i32, i32, i32, i32) {
    %c0_i32 = arith.constant 0 : i32
    %c0_i32_0 = arith.constant 0 : i32
    %c0_i32_1 = arith.constant 0 : i32
    %c0_i32_2 = arith.constant 0 : i32
    return %arg0, %c0_i32, %c0_i32_0, %c0_i32_1 : i32, i32, i32, i32
  }
  func.func @transform_2(%arg0: i32) -> (i32, i32, i32) {
    %c0_i32 = arith.constant 0 : i32
    %c0_i32_0 = arith.constant 0 : i32
    %c0_i32_1 = arith.constant 0 : i32
    return %arg0, %c0_i32, %c0_i32_0 : i32, i32, i32
  }
}

</mosaic_0001>

<llo_original>
// kernel: tpu_custom_call.1
$region0: #{tpu_custom_call.1}
  #allocation0 [shape = 'u32[]', space=smem, size = 0x4, offset = 0x4, fixed_abs, tag = 'smem constant byte address 0x4 - core index']
  #allocation1 [shape = 'u32[144,128]{1,0:T(1,128)}', space=vmem, size = 0x12000, scoped, tag = 'internal scratch']
  %s0 = inlined_call_operand.hbm [shape: f32[4,8,16,128], index: 0, kind: input, shape index: {}]
  %s1 = inlined_call_operand.hbm [shape: f32[4,8,16,128], index: 1, kind: input, shape index: {}]
  %s2 = inlined_call_operand.vmem [shape: f32[4,27,128], index: 2, kind: output, shape index: {}]
  %s3 = sld [smem:[#allocation0]]
  $region49: #{tpu_custom_call.1} parent=0
    _
  %s5 = ssub.s32 1, %s3
  %s6 = scalar_select 0, %s5, %s3
  $region1: #{tpu_custom_call.1} parent=0
    #allocation2 [shape = 'u8[131072]{0}', space=vmem, size = 0x20000, scoped, tag = 'input window, operand 0']
    #allocation3 [shape = 's32[2]{0}', space=sflag, size = 0x8, scoped, tag = 'scoped memory for tpu_custom_call.1']
    #allocation4 [shape = 'u8[131072]{0}', space=vmem, size = 0x20000, scoped, tag = 'input window, operand 1']
    #allocation5 [shape = 's32[2]{0}', space=sflag, size = 0x8, scoped, tag = 'scoped memory for tpu_custom_call.1']
    %7 = vsyncpa [#allocation3], 0
    %s8 = scalar_lea.sflag [#allocation3], 1
    %9 = vsyncpa %s8, 0
    %10 = vsyncpa [#allocation5], 0
    %s11 = scalar_lea.sflag [#allocation5], 1
    %12 = vsyncpa %s11, 0
    loop: start=0, step=1, limit=6
    $region2: #{tpu_custom_call.1} parent=1 // loop_pre_header
      _
    $region3: #{tpu_custom_call.1} parent=1 // loop_header
      %s14 = sphi 0, %s18
      %p15 = scmp.ge.s32.totalorder %s14, 6
      %s24 = sphi 0, %s26
      %s27 = sphi 0, %s24
      %s28 = sphi 0, %s27
      %s44 = sphi 0, %s28
      %s50 = sphi 0, %s52
      %s53 = sphi 0, %s50
      %s54 = sphi 0, %s53
      %s70 = sphi 0, %s54
      %s76 = sphi 0, %s78
      %s79 = sphi 0, %s76
      %s80 = sphi 0, %s79
      %s96 = sphi 0, %s80
    $region4: #{tpu_custom_call.1} parent=1 // loop_header_branch
      %17 = sbr.rel (%p15) target = $region8
    $region5: #{tpu_custom_call.1} parent=1 // loop_body
      %s19 = ssub.s32 %s14, 1
      %s20 = ssub.s32 %s14, 2
      %s21 = sadd.s32 %s14, 1
      %s22 = ssub.s32 %s14, %s21
      %p23 = scmp.eq.s32.totalorder %s22, 0
      %s25 = sadd.s32 %s24, 1
      %s26 = scalar_select %p23, %s24, %s25
      %p29 = pneg %p23
      %p30 = scmp.eq.s32.totalorder %s14, 3
      %p31 = por %p29, %p30
      %p32 = scmp.ne.s32.totalorder %s24, %s27
      %p33 = scmp.eq.s32.totalorder %s14, 0
      %p34 = por %p32, %p33
      %p35 = scmp.ne.s32.totalorder %s24, %s27
      %p36 = scmp.eq.s32.totalorder %s19, 3
      %p37 = por %p35, %p36
      %p38 = scmp.ne.s32.totalorder %s27, %s28
      %p39 = scmp.eq.s32.totalorder %s19, 0
      %p40 = por %p38, %p39
      %p41 = scmp.ne.s32.totalorder %s27, %s28
      %p42 = scmp.eq.s32.totalorder %s20, 3
      %p43 = por %p41, %p42
      %p45 = scmp.ne.s32.totalorder %s28, %s44
      %p46 = scmp.eq.s32.totalorder %s20, 0
      %p47 = por %p45, %p46
      %s48 = ssub.s32 %s14, %s21
      %p49 = scmp.eq.s32.totalorder %s48, 0
      %s51 = sadd.s32 %s50, 1
      %s52 = scalar_select %p49, %s50, %s51
      %p55 = pneg %p49
      %p56 = scmp.eq.s32.totalorder %s14, 3
      %p57 = por %p55, %p56
      %p58 = scmp.ne.s32.totalorder %s50, %s53
      %p59 = scmp.eq.s32.totalorder %s14, 0
      %p60 = por %p58, %p59
      %p61 = scmp.ne.s32.totalorder %s50, %s53
      %p62 = scmp.eq.s32.totalorder %s19, 3
      %p63 = por %p61, %p62
      %p64 = scmp.ne.s32.totalorder %s53, %s54
      %p65 = scmp.eq.s32.totalorder %s19, 0
      %p66 = por %p64, %p65
      %p67 = scmp.ne.s32.totalorder %s53, %s54
      %p68 = scmp.eq.s32.totalorder %s20, 3
      %p69 = por %p67, %p68
      %p71 = scmp.ne.s32.totalorder %s54, %s70
      %p72 = scmp.eq.s32.totalorder %s20, 0
      %p73 = por %p71, %p72
      %s74 = ssub.s32 %s14, %s21
      %p75 = scmp.eq.s32.totalorder %s74, 0
      %s77 = sadd.s32 %s76, 1
      %s78 = scalar_select %p75, %s76, %s77
      %p81 = pneg %p75
      %p82 = scmp.eq.s32.totalorder %s14, 3
      %p83 = por %p81, %p82
      %p84 = scmp.ne.s32.totalorder %s76, %s79
      %p85 = scmp.eq.s32.totalorder %s14, 0
      %p86 = por %p84, %p85
      %p87 = scmp.ne.s32.totalorder %s76, %s79
      %p88 = scmp.eq.s32.totalorder %s19, 3
      %p89 = por %p87, %p88
      %p90 = scmp.ne.s32.totalorder %s79, %s80
      %p91 = scmp.eq.s32.totalorder %s19, 0
      %p92 = por %p90, %p91
      %p93 = scmp.ne.s32.totalorder %s79, %s80
      %p94 = scmp.eq.s32.totalorder %s20, 3
      %p95 = por %p93, %p94
      %p97 = scmp.ne.s32.totalorder %s80, %s96
      %p98 = scmp.eq.s32.totalorder %s20, 0
      %p99 = por %p97, %p98
      %p100 = scmp.le.s32.totalorder 1, %s14
      %p101 = scmp.lt.s32.totalorder %s14, 5
      %p102 = pnand %p100, %p101
      %p103 = pneg %p102
      // Predicated region
      $region9: #{tpu_custom_call.1} parent=5 // pred_check
        _
      $region10: #{tpu_custom_call.1} parent=5 // pred_check_branch
        %105 = sbr.rel (%p102) target = $region12
      $region11: #{tpu_custom_call.1} parent=5 // pred_region
        %s106 = ssub.s32 %s14, 1
      $region12: #{tpu_custom_call.1} parent=5 // pred_fallthru
        _
      %p107 = scmp.lt.s32.totalorder %s14, 4
      // Predicated region
      $region13: #{tpu_custom_call.1} parent=5 // pred_check
        %p108 = pneg %p107
      $region14: #{tpu_custom_call.1} parent=5 // pred_check_branch
        %110 = sbr.rel (%p108) target = $region16
      $region15: #{tpu_custom_call.1} parent=5 // pred_region
        // Predicated region
        $region17: #{tpu_custom_call.1} parent=15 // pred_check
          %p111 = pneg %p34
        $region18: #{tpu_custom_call.1} parent=15 // pred_check_branch
          %113 = sbr.rel (%p111) target = $region20
        $region19: #{tpu_custom_call.1} parent=15 // pred_region
          %s114 = sand.u32 %s24, 1
          %s115 = scalar_lea.sflag [#allocation3], %s114
          %s116 = sand.u32 %s24, 1
          %s117 = smul.addr %s116, 128
          %s118 = scalar_lea.vmem [#allocation2], %s117
          %s120 = ssub.s32 2048, 2048
          %121 = vsyncadd %s115, %s120
          %s122 = smul.addr %s14, 16
          %s123 = smul.addr %s122, 128
          %s124 = scalar_lea.hbm %s0, %s123
          %s125 = sshll.u32 %s118, 4
          %s126 = int_to_ptr.vmem [resolvable:$true] %s125
          %131 = dma.hbm_to_vmem [thread:$0]  %s124, 2048, %s126, %s115, 128, 128, 8
        $region20: #{tpu_custom_call.1} parent=15 // pred_fallthru
          _
        // Predicated region
        $region21: #{tpu_custom_call.1} parent=15 // pred_check
          %p132 = pneg %p60
        $region22: #{tpu_custom_call.1} parent=15 // pred_check_branch
          %134 = sbr.rel (%p132) target = $region24
        $region23: #{tpu_custom_call.1} parent=15 // pred_region
          %s135 = sand.u32 %s50, 1
          %s136 = scalar_lea.sflag [#allocation5], %s135
          %s137 = sand.u32 %s50, 1
          %s138 = smul.addr %s137, 128
          %s139 = scalar_lea.vmem [#allocation4], %s138
          %s141 = ssub.s32 2048, 2048
          %142 = vsyncadd %s136, %s141
          %s143 = smul.addr %s14, 16
          %s144 = smul.addr %s143, 128
          %s145 = scalar_lea.hbm %s1, %s144
          %s146 = sshll.u32 %s139, 4
          %s147 = int_to_ptr.vmem [resolvable:$true] %s146
          %152 = dma.hbm_to_vmem [thread:$0]  %s145, 2048, %s147, %s136, 128, 128, 8
        $region24: #{tpu_custom_call.1} parent=15 // pred_fallthru
          _
      $region16: #{tpu_custom_call.1} parent=5 // pred_fallthru
        _
      %p153 = scmp.le.s32.totalorder 1, %s14
      %p154 = scmp.lt.s32.totalorder %s14, 5
      %p155 = pnand %p153, %p154
      %p156 = pneg %p155
      // Predicated region
      $region25: #{tpu_custom_call.1} parent=5 // pred_check
        _
      $region26: #{tpu_custom_call.1} parent=5 // pred_check_branch
        %158 = sbr.rel (%p155) target = $region28
      $region27: #{tpu_custom_call.1} parent=5 // pred_region
        %s159 = ssub.s32 %s14, 1
        %s160 = sand.u32 %s27, 1
        %s161 = scalar_lea.sflag [#allocation3], %s160
        %s162 = sand.u32 %s27, 1
        %s163 = smul.addr %s162, 128
        %s164 = scalar_lea.vmem [#allocation2], %s163
        // Predicated region
        $region29: #{tpu_custom_call.1} parent=27 // pred_check
          %p165 = pneg %p40
        $region30: #{tpu_custom_call.1} parent=27 // pred_check_branch
          %167 = sbr.rel (%p165) target = $region32
        $region31: #{tpu_custom_call.1} parent=27 // pred_region
          %168 = dma.done %s161, 2048
        $region32: #{tpu_custom_call.1} parent=27 // pred_fallthru
          _
        %s169 = sand.u32 %s53, 1
        %s170 = scalar_lea.sflag [#allocation5], %s169
        %s171 = sand.u32 %s53, 1
        %s172 = smul.addr %s171, 128
        %s173 = scalar_lea.vmem [#allocation4], %s172
        // Predicated region
        $region33: #{tpu_custom_call.1} parent=27 // pred_check
          %p174 = pneg %p66
        $region34: #{tpu_custom_call.1} parent=27 // pred_check_branch
          %176 = sbr.rel (%p174) target = $region36
        $region35: #{tpu_custom_call.1} parent=27 // pred_region
          %177 = dma.done %s170, 2048
        $region36: #{tpu_custom_call.1} parent=27 // pred_fallthru
          _
        %s178 = sand.u32 %s27, 1
        %s179 = scalar_lea.sflag [#allocation3], %s178
        %s180 = sand.u32 %s27, 1
        %s181 = smul.addr %s180, 128
        %s182 = scalar_lea.vmem [#allocation2], %s181
        %p183 = pneg %p40
        %p184 = pneg %p37
        %s185 = sand.u32 %s53, 1
        %s186 = scalar_lea.sflag [#allocation5], %s185
        %s187 = sand.u32 %s53, 1
        %s188 = smul.addr %s187, 128
        %s189 = scalar_lea.vmem [#allocation4], %s188
        %p190 = pneg %p66
        %p191 = pneg %p63
        %p192 = pneg %p92
        %p193 = pneg %p89
        %p194 = scmp.lt.s32.totalorder %s19, 3
        %s195 = scalar_select %p194, %s19, 3
        %s196 = smul.addr %s195, 4
        %s197 = smul.addr %s196, 8
        %s198 = scalar_lea.vmem %s2, %s197
        %p199 = scmp.lt.s32.totalorder %s19, 3
        %s200 = scalar_select %p199, %s19, 3
        %s201 = smul.addr %s200, 4
        %s202 = smul.addr %s201, 8
        %s203 = scalar_lea.vmem %s2, %s202
        %v204 = vld [vmem:[%s164] sm:$0xff]
        %v205 = vld [vmem:[%s164 + $0x8] sm:$0xff]
        %v206 = vld [vmem:[%s164 + $0x10] sm:$0xff]
        %v207 = vld [vmem:[%s164 + $0x18] sm:$0xff]
        %v208 = vld [vmem:[%s164 + $0x20] sm:$0xff]
        %v209 = vld [vmem:[%s164 + $0x28] sm:$0xff]
        %v210 = vld [vmem:[%s164 + $0x30] sm:$0xff]
        %v211 = vld [vmem:[%s164 + $0x38] sm:$0xff]
        %v212 = vld [vmem:[%s164 + $0x40] sm:$0xff]
        %v213 = vld [vmem:[%s164 + $0x48] sm:$0xff]
        %v214 = vld [vmem:[%s164 + $0x50] sm:$0xff]
        %v215 = vld [vmem:[%s164 + $0x58] sm:$0xff]
        %v216 = vld [vmem:[%s164 + $0x60] sm:$0xff]
        %v217 = vld [vmem:[%s164 + $0x68] sm:$0xff]
        %v218 = vld [vmem:[%s164 + $0x70] sm:$0xff]
        %v219 = vld [vmem:[%s164 + $0x78] sm:$0xff]
        %v220 = vld [vmem:[%s173] sm:$0xff]
        %v221 = vld [vmem:[%s173 + $0x8] sm:$0xff]
        %v222 = vld [vmem:[%s173 + $0x10] sm:$0xff]
        %v223 = vld [vmem:[%s173 + $0x18] sm:$0xff]
        %v224 = vld [vmem:[%s173 + $0x20] sm:$0xff]
        %v225 = vld [vmem:[%s173 + $0x28] sm:$0xff]
        %v226 = vld [vmem:[%s173 + $0x30] sm:$0xff]
        %v227 = vld [vmem:[%s173 + $0x38] sm:$0xff]
        %v228 = vld [vmem:[%s173 + $0x40] sm:$0xff]
        %v229 = vld [vmem:[%s173 + $0x48] sm:$0xff]
        %v230 = vld [vmem:[%s173 + $0x50] sm:$0xff]
        %v231 = vld [vmem:[%s173 + $0x58] sm:$0xff]
        %v232 = vld [vmem:[%s173 + $0x60] sm:$0xff]
        %v233 = vld [vmem:[%s173 + $0x68] sm:$0xff]
        %v234 = vld [vmem:[%s173 + $0x70] sm:$0xff]
        %v235 = vld [vmem:[%s173 + $0x78] sm:$0xff]
        %v236 = vlog2.pop %v204
        %v237 = vmul.f32 %v236, 0.6931472
        %v238 = vlog2.pop %v205
        %v239 = vmul.f32 %v238, 0.6931472
        %v240 = vlog2.pop %v206
        %v241 = vmul.f32 %v240, 0.6931472
        %v242 = vlog2.pop %v207
        %v243 = vmul.f32 %v242, 0.6931472
        %v244 = vlog2.pop %v208
        %v245 = vmul.f32 %v244, 0.6931472
        %v246 = vlog2.pop %v209
        %v247 = vmul.f32 %v246, 0.6931472
        %v248 = vlog2.pop %v210
        %v249 = vmul.f32 %v248, 0.6931472
        %v250 = vlog2.pop %v211
        %v251 = vmul.f32 %v250, 0.6931472
        %v252 = vlog2.pop %v212
        %v253 = vmul.f32 %v252, 0.6931472
        %v254 = vlog2.pop %v213
        %v255 = vmul.f32 %v254, 0.6931472
        %v256 = vlog2.pop %v214
        %v257 = vmul.f32 %v256, 0.6931472
        %v258 = vlog2.pop %v215
        %v259 = vmul.f32 %v258, 0.6931472
        %v260 = vlog2.pop %v216
        %v261 = vmul.f32 %v260, 0.6931472
        %v262 = vlog2.pop %v217
        %v263 = vmul.f32 %v262, 0.6931472
        %v264 = vlog2.pop %v218
        %v265 = vmul.f32 %v264, 0.6931472
        %v266 = vlog2.pop %v219
        %v267 = vmul.f32 %v266, 0.6931472
        %v268 = vmax.f32 %v237, -100.0
        %v269 = vmax.f32 %v239, -100.0
        %v270 = vmax.f32 %v241, -100.0
        %v271 = vmax.f32 %v243, -100.0
        %v272 = vmax.f32 %v245, -100.0
        %v273 = vmax.f32 %v247, -100.0
        %v274 = vmax.f32 %v249, -100.0
        %v275 = vmax.f32 %v251, -100.0
        %v276 = vmax.f32 %v253, -100.0
        %v277 = vmax.f32 %v255, -100.0
        %v278 = vmax.f32 %v257, -100.0
        %v279 = vmax.f32 %v259, -100.0
        %v280 = vmax.f32 %v261, -100.0
        %v281 = vmax.f32 %v263, -100.0
        %v282 = vmax.f32 %v265, -100.0
        %v283 = vmax.f32 %v267, -100.0
        %v284 = vsub.f32 1.0, %v204
        %v285 = vsub.f32 1.0, %v205
        %v286 = vsub.f32 1.0, %v206
        %v287 = vsub.f32 1.0, %v207
        %v288 = vsub.f32 1.0, %v208
        %v289 = vsub.f32 1.0, %v209
        %v290 = vsub.f32 1.0, %v210
        %v291 = vsub.f32 1.0, %v211
        %v292 = vsub.f32 1.0, %v212
        %v293 = vsub.f32 1.0, %v213
        %v294 = vsub.f32 1.0, %v214
        %v295 = vsub.f32 1.0, %v215
        %v296 = vsub.f32 1.0, %v216
        %v297 = vsub.f32 1.0, %v217
        %v298 = vsub.f32 1.0, %v218
        %v299 = vsub.f32 1.0, %v219
        %v300 = vlog2.pop %v284
        %v301 = vmul.f32 %v300, 0.6931472
        %v302 = vlog2.pop %v285
        %v303 = vmul.f32 %v302, 0.6931472
        %v304 = vlog2.pop %v286
        %v305 = vmul.f32 %v304, 0.6931472
        %v306 = vlog2.pop %v287
        %v307 = vmul.f32 %v306, 0.6931472
        %v308 = vlog2.pop %v288
        %v309 = vmul.f32 %v308, 0.6931472
        %v310 = vlog2.pop %v289
        %v311 = vmul.f32 %v310, 0.6931472
        %v312 = vlog2.pop %v290
        %v313 = vmul.f32 %v312, 0.6931472
        %v314 = vlog2.pop %v291
        %v315 = vmul.f32 %v314, 0.6931472
        %v316 = vlog2.pop %v292
        %v317 = vmul.f32 %v316, 0.6931472
        %v318 = vlog2.pop %v293
        %v319 = vmul.f32 %v318, 0.6931472
        %v320 = vlog2.pop %v294
        %v321 = vmul.f32 %v320, 0.6931472
        %v322 = vlog2.pop %v295
        %v323 = vmul.f32 %v322, 0.6931472
        %v324 = vlog2.pop %v296
        %v325 = vmul.f32 %v324, 0.6931472
        %v326 = vlog2.pop %v297
        %v327 = vmul.f32 %v326, 0.6931472
        %v328 = vlog2.pop %v298
        %v329 = vmul.f32 %v328, 0.6931472
        %v330 = vlog2.pop %v299
        %v331 = vmul.f32 %v330, 0.6931472
        %v332 = vmax.f32 %v301, -100.0
        %v333 = vmax.f32 %v303, -100.0
        %v334 = vmax.f32 %v305, -100.0
        %v335 = vmax.f32 %v307, -100.0
        %v336 = vmax.f32 %v309, -100.0
        %v337 = vmax.f32 %v311, -100.0
        %v338 = vmax.f32 %v313, -100.0
        %v339 = vmax.f32 %v315, -100.0
        %v340 = vmax.f32 %v317, -100.0
        %v341 = vmax.f32 %v319, -100.0
        %v342 = vmax.f32 %v321, -100.0
        %v343 = vmax.f32 %v323, -100.0
        %v344 = vmax.f32 %v325, -100.0
        %v345 = vmax.f32 %v327, -100.0
        %v346 = vmax.f32 %v329, -100.0
        %v347 = vmax.f32 %v331, -100.0
        %v348 = vsub.f32 %v268, %v332
        %v349 = vsub.f32 %v269, %v333
        %v350 = vsub.f32 %v270, %v334
        %v351 = vsub.f32 %v271, %v335
        %v352 = vsub.f32 %v272, %v336
        %v353 = vsub.f32 %v273, %v337
        %v354 = vsub.f32 %v274, %v338
        %v355 = vsub.f32 %v275, %v339
        %v356 = vsub.f32 %v276, %v340
        %v357 = vsub.f32 %v277, %v341
        %v358 = vsub.f32 %v278, %v342
        %v359 = vsub.f32 %v279, %v343
        %v360 = vsub.f32 %v280, %v344
        %v361 = vsub.f32 %v281, %v345
        %v362 = vsub.f32 %v282, %v346
        %v363 = vsub.f32 %v283, %v347
        %v364 = vmul.f32 %v220, %v348
        %v365 = vmul.f32 %v221, %v349
        %v366 = vmul.f32 %v222, %v350
        %v367 = vmul.f32 %v223, %v351
        %v368 = vmul.f32 %v224, %v352
        %v369 = vmul.f32 %v225, %v353
        %v370 = vmul.f32 %v226, %v354
        %v371 = vmul.f32 %v227, %v355
        %v372 = vmul.f32 %v228, %v356
        %v373 = vmul.f32 %v229, %v357
        %v374 = vmul.f32 %v230, %v358
        %v375 = vmul.f32 %v231, %v359
        %v376 = vmul.f32 %v232, %v360
        %v377 = vmul.f32 %v233, %v361
        %v378 = vmul.f32 %v234, %v362
        %v379 = vmul.f32 %v235, %v363
        %v380 = vadd.f32 %v332, %v364
        %v381 = vadd.f32 %v333, %v365
        %v382 = vadd.f32 %v334, %v366
        %v383 = vadd.f32 %v335, %v367
        %v384 = vadd.f32 %v336, %v368
        %v385 = vadd.f32 %v337, %v369
        %v386 = vadd.f32 %v338, %v370
        %v387 = vadd.f32 %v339, %v371
        %v388 = vadd.f32 %v340, %v372
        %v389 = vadd.f32 %v341, %v373
        %v390 = vadd.f32 %v342, %v374
        %v391 = vadd.f32 %v343, %v375
        %v392 = vadd.f32 %v344, %v376
        %v393 = vadd.f32 %v345, %v377
        %v394 = vadd.f32 %v346, %v378
        %v395 = vadd.f32 %v347, %v379
        %v396 = vadd.f32 %v380, %v382
        %v397 = vadd.f32 %v396, %v384
        %v398 = vadd.f32 %v397, %v386
        %v399 = vadd.f32 %v398, %v388
        %v400 = vadd.f32 %v399, %v390
        %v401 = vadd.f32 %v400, %v392
        %v402 = vadd.f32 %v401, %v394
        %v403 = vadd.f32 %v381, %v383
        %v404 = vadd.f32 %v403, %v385
        %v405 = vadd.f32 %v404, %v387
        %v406 = vadd.f32 %v405, %v389
        %v407 = vadd.f32 %v406, %v391
        %v408 = vadd.f32 %v407, %v393
        %v409 = vadd.f32 %v408, %v395
        %v410 = vadd.f32 %v402, %v409
        %v411 = vrot.slane %v410, 4
        %v412 = vadd.f32 %v410, %v411
        %v413 = vrot.slane %v412, 2
        %v414 = vadd.f32 %v412, %v413
        %v415 = vrot.slane %v414, 1
        %v416 = vadd.f32 %v414, %v415
        %v417 = vsub.f32 0.0, %v416
        %vm434 = vcmask 1046528
        %v435 = vrot.slane %v204, 1
        %v436 = vrot.slane %v205, 1
        %v437 = vsel %vm434, %v435, %v436
        %v438 = vrot.slane %v206, 1
        %v439 = vrot.slane %v207, 1
        %v440 = vsel %vm434, %v438, %v439
        %v441 = vrot.slane %v208, 1
        %v442 = vrot.slane %v209, 1
        %v443 = vsel %vm434, %v441, %v442
        %v444 = vrot.slane %v210, 1
        %v445 = vrot.slane %v211, 1
        %v446 = vsel %vm434, %v444, %v445
        %v447 = vrot.slane %v212, 1
        %v448 = vrot.slane %v213, 1
        %v449 = vsel %vm434, %v447, %v448
        %v450 = vrot.slane %v214, 1
        %v451 = vrot.slane %v215, 1
        %v452 = vsel %vm434, %v450, %v451
        %v453 = vrot.slane %v216, 1
        %v454 = vrot.slane %v217, 1
        %v455 = vsel %vm434, %v453, %v454
        %v456 = vrot.slane %v218, 1
        %v457 = vrot.slane %v219, 1
        %v458 = vsel %vm434, %v456, %v457
        %v483 = vsel %vm434, %v436, %v435
        %v484 = vsel %vm434, %v439, %v438
        %v485 = vsel %vm434, %v442, %v441
        %v486 = vsel %vm434, %v445, %v444
        %v487 = vsel %vm434, %v448, %v447
        %v488 = vsel %vm434, %v451, %v450
        %v489 = vsel %vm434, %v454, %v453
        %v490 = vsel %vm434, %v457, %v456
        %491 = vrot.lane.b32.xlu0 %v204, 127
        %v492 = vpop.permute.xlu0 %491
        %493 = vrot.lane.b32.xlu0 %v205, 127
        %v494 = vpop.permute.xlu0 %493
        %495 = vrot.lane.b32.xlu0 %v206, 127
        %v496 = vpop.permute.xlu0 %495
        %497 = vrot.lane.b32.xlu0 %v207, 127
        %v498 = vpop.permute.xlu0 %497
        %499 = vrot.lane.b32.xlu0 %v208, 127
        %v500 = vpop.permute.xlu0 %499
        %501 = vrot.lane.b32.xlu0 %v209, 127
        %v502 = vpop.permute.xlu0 %501
        %503 = vrot.lane.b32.xlu0 %v210, 127
        %v504 = vpop.permute.xlu0 %503
        %505 = vrot.lane.b32.xlu0 %v211, 127
        %v506 = vpop.permute.xlu0 %505
        %507 = vrot.lane.b32.xlu0 %v212, 127
        %v508 = vpop.permute.xlu0 %507
        %509 = vrot.lane.b32.xlu0 %v213, 127
        %v510 = vpop.permute.xlu0 %509
        %511 = vrot.lane.b32.xlu0 %v214, 127
        %v512 = vpop.permute.xlu0 %511
        %513 = vrot.lane.b32.xlu0 %v215, 127
        %v514 = vpop.permute.xlu0 %513
        %515 = vrot.lane.b32.xlu0 %v216, 127
        %v516 = vpop.permute.xlu0 %515
        %517 = vrot.lane.b32.xlu0 %v217, 127
        %v518 = vpop.permute.xlu0 %517
        %519 = vrot.lane.b32.xlu0 %v218, 127
        %v520 = vpop.permute.xlu0 %519
        %521 = vrot.lane.b32.xlu0 %v219, 127
        %v522 = vpop.permute.xlu0 %521
        %547 = vrot.lane.b32.xlu0 %v437, 127
        %v548 = vpop.permute.xlu0 %547
        %549 = vrot.lane.b32.xlu0 %v483, 127
        %v550 = vpop.permute.xlu0 %549
        %551 = vrot.lane.b32.xlu0 %v440, 127
        %v552 = vpop.permute.xlu0 %551
        %553 = vrot.lane.b32.xlu0 %v484, 127
        %v554 = vpop.permute.xlu0 %553
        %555 = vrot.lane.b32.xlu0 %v443, 127
        %v556 = vpop.permute.xlu0 %555
        %557 = vrot.lane.b32.xlu0 %v485, 127
        %v558 = vpop.permute.xlu0 %557
        %559 = vrot.lane.b32.xlu0 %v446, 127
        %v560 = vpop.permute.xlu0 %559
        %561 = vrot.lane.b32.xlu0 %v486, 127
        %v562 = vpop.permute.xlu0 %561
        %563 = vrot.lane.b32.xlu0 %v449, 127
        %v564 = vpop.permute.xlu0 %563
        %565 = vrot.lane.b32.xlu0 %v487, 127
        %v566 = vpop.permute.xlu0 %565
        %567 = vrot.lane.b32.xlu0 %v452, 127
        %v568 = vpop.permute.xlu0 %567
        %569 = vrot.lane.b32.xlu0 %v488, 127
        %v570 = vpop.permute.xlu0 %569
        %571 = vrot.lane.b32.xlu0 %v455, 127
        %v572 = vpop.permute.xlu0 %571
        %573 = vrot.lane.b32.xlu0 %v489, 127
        %v574 = vpop.permute.xlu0 %573
        %575 = vrot.lane.b32.xlu0 %v458, 127
        %v576 = vpop.permute.xlu0 %575
        %577 = vrot.lane.b32.xlu0 %v490, 127
        %v578 = vpop.permute.xlu0 %577
        %v611 = vrot.slane %v220, 1
        %v612 = vrot.slane %v221, 1
        %v613 = vsel %vm434, %v611, %v612
        %v614 = vrot.slane %v222, 1
        %v615 = vrot.slane %v223, 1
        %v616 = vsel %vm434, %v614, %v615
        %v617 = vrot.slane %v224, 1
        %v618 = vrot.slane %v225, 1
        %v619 = vsel %vm434, %v617, %v618
        %v620 = vrot.slane %v226, 1
        %v621 = vrot.slane %v227, 1
        %v622 = vsel %vm434, %v620, %v621
        %v623 = vrot.slane %v228, 1
        %v624 = vrot.slane %v229, 1
        %v625 = vsel %vm434, %v623, %v624
        %v626 = vrot.slane %v230, 1
        %v627 = vrot.slane %v231, 1
        %v628 = vsel %vm434, %v626, %v627
        %v629 = vrot.slane %v232, 1
        %v630 = vrot.slane %v233, 1
        %v631 = vsel %vm434, %v629, %v630
        %v632 = vrot.slane %v234, 1
        %v633 = vrot.slane %v235, 1
        %v634 = vsel %vm434, %v632, %v633
        %v659 = vsel %vm434, %v612, %v611
        %v660 = vsel %vm434, %v615, %v614
        %v661 = vsel %vm434, %v618, %v617
        %v662 = vsel %vm434, %v621, %v620
        %v663 = vsel %vm434, %v624, %v623
        %v664 = vsel %vm434, %v627, %v626
        %v665 = vsel %vm434, %v630, %v629
        %v666 = vsel %vm434, %v633, %v632
        %667 = vrot.lane.b32.xlu0 %v220, 127
        %v668 = vpop.permute.xlu0 %667
        %669 = vrot.lane.b32.xlu0 %v221, 127
        %v670 = vpop.permute.xlu0 %669
        %671 = vrot.lane.b32.xlu0 %v222, 127
        %v672 = vpop.permute.xlu0 %671
        %673 = vrot.lane.b32.xlu0 %v223, 127
        %v674 = vpop.permute.xlu0 %673
        %675 = vrot.lane.b32.xlu0 %v224, 127
        %v676 = vpop.permute.xlu0 %675
        %677 = vrot.lane.b32.xlu0 %v225, 127
        %v678 = vpop.permute.xlu0 %677
        %679 = vrot.lane.b32.xlu0 %v226, 127
        %v680 = vpop.permute.xlu0 %679
        %681 = vrot.lane.b32.xlu0 %v227, 127
        %v682 = vpop.permute.xlu0 %681
        %683 = vrot.lane.b32.xlu0 %v228, 127
        %v684 = vpop.permute.xlu0 %683
        %685 = vrot.lane.b32.xlu0 %v229, 127
        %v686 = vpop.permute.xlu0 %685
        %687 = vrot.lane.b32.xlu0 %v230, 127
        %v688 = vpop.permute.xlu0 %687
        %689 = vrot.lane.b32.xlu0 %v231, 127
        %v690 = vpop.permute.xlu0 %689
        %691 = vrot.lane.b32.xlu0 %v232, 127
        %v692 = vpop.permute.xlu0 %691
        %693 = vrot.lane.b32.xlu0 %v233, 127
        %v694 = vpop.permute.xlu0 %693
        %695 = vrot.lane.b32.xlu0 %v234, 127
        %v696 = vpop.permute.xlu0 %695
        %697 = vrot.lane.b32.xlu0 %v235, 127
        %v698 = vpop.permute.xlu0 %697
        %723 = vrot.lane.b32.xlu0 %v613, 127
        %v724 = vpop.permute.xlu0 %723
        %725 = vrot.lane.b32.xlu0 %v659, 127
        %v726 = vpop.permute.xlu0 %725
        %727 = vrot.lane.b32.xlu0 %v616, 127
        %v728 = vpop.permute.xlu0 %727
        %729 = vrot.lane.b32.xlu0 %v660, 127
        %v730 = vpop.permute.xlu0 %729
        %731 = vrot.lane.b32.xlu0 %v619, 127
        %v732 = vpop.permute.xlu0 %731
        %733 = vrot.lane.b32.xlu0 %v661, 127
        %v734 = vpop.permute.xlu0 %733
        %735 = vrot.lane.b32.xlu0 %v622, 127
        %v736 = vpop.permute.xlu0 %735
        %737 = vrot.lane.b32.xlu0 %v662, 127
        %v738 = vpop.permute.xlu0 %737
        %739 = vrot.lane.b32.xlu0 %v625, 127
        %v740 = vpop.permute.xlu0 %739
        %741 = vrot.lane.b32.xlu0 %v663, 127
        %v742 = vpop.permute.xlu0 %741
        %743 = vrot.lane.b32.xlu0 %v628, 127
        %v744 = vpop.permute.xlu0 %743
        %745 = vrot.lane.b32.xlu0 %v664, 127
        %v746 = vpop.permute.xlu0 %745
        %747 = vrot.lane.b32.xlu0 %v631, 127
        %v748 = vpop.permute.xlu0 %747
        %749 = vrot.lane.b32.xlu0 %v665, 127
        %v750 = vpop.permute.xlu0 %749
        %751 = vrot.lane.b32.xlu0 %v634, 127
        %v752 = vpop.permute.xlu0 %751
        %753 = vrot.lane.b32.xlu0 %v666, 127
        %v754 = vpop.permute.xlu0 %753
        %v771 = vlaneseq
        %v772 = vand.u32 %v771, 127
        %v773 = vlaneseq
        %v774 = vshrl.u32 %v773, 7
        %v775 = vadd.s32 %v774, 8
        %vm776 = vcmp.lt.s32.totalorder %v772, 127
        %v777 = vsel %vm776, 1, 0
        %v778 = vcvt.s32.f32 %v777
        %vm779 = vcmp.lt.s32.totalorder %v774, 15
        %vm780 = vcmp.lt.s32.totalorder %v775, 15
        %v781 = vsel %vm779, 1, 0
        %v782 = vsel %vm780, 1, 0
        %v783 = vcvt.s32.f32 %v781
        %v784 = vcvt.s32.f32 %v782
        %v785 = vmul.f32 %v783, %v778
        %v786 = vmul.f32 %v784, %v778
        %v787 = vsub.f32 %v206, %v204
        %v788 = vsub.f32 %v207, %v205
        %v789 = vsub.f32 %v208, %v206
        %v790 = vsub.f32 %v209, %v207
        %v791 = vsub.f32 %v210, %v208
        %v792 = vsub.f32 %v211, %v209
        %v793 = vsub.f32 %v212, %v210
        %v794 = vsub.f32 %v213, %v211
        %v795 = vsub.f32 %v214, %v212
        %v796 = vsub.f32 %v215, %v213
        %v797 = vsub.f32 %v216, %v214
        %v798 = vsub.f32 %v217, %v215
        %v799 = vsub.f32 %v218, %v216
        %v800 = vsub.f32 %v219, %v217
        %v801 = vsub.f32 %v222, %v220
        %v802 = vsub.f32 %v223, %v221
        %v803 = vsub.f32 %v224, %v222
        %v804 = vsub.f32 %v225, %v223
        %v805 = vsub.f32 %v226, %v224
        %v806 = vsub.f32 %v227, %v225
        %v807 = vsub.f32 %v228, %v226
        %v808 = vsub.f32 %v229, %v227
        %v809 = vsub.f32 %v230, %v228
        %v810 = vsub.f32 %v231, %v229
        %v811 = vsub.f32 %v232, %v230
        %v812 = vsub.f32 %v233, %v231
        %v813 = vsub.f32 %v234, %v232
        %v814 = vsub.f32 %v235, %v233
        %v815 = vmul.f32 %v787, %v801
        %v816 = vmul.f32 %v788, %v802
        %v817 = vmul.f32 %v789, %v803
        %v818 = vmul.f32 %v790, %v804
        %v819 = vmul.f32 %v791, %v805
        %v820 = vmul.f32 %v792, %v806
        %v821 = vmul.f32 %v793, %v807
        %v822 = vmul.f32 %v794, %v808
        %v823 = vmul.f32 %v795, %v809
        %v824 = vmul.f32 %v796, %v810
        %v825 = vmul.f32 %v797, %v811
        %v826 = vmul.f32 %v798, %v812
        %v827 = vmul.f32 %v799, %v813
        %v828 = vmul.f32 %v800, %v814
        %v829 = vadd.f32 %v815, %v817
        %v830 = vadd.f32 %v829, %v819
        %v831 = vadd.f32 %v830, %v821
        %v832 = vadd.f32 %v831, %v823
        %v833 = vadd.f32 %v832, %v825
        %v834 = vadd.f32 %v833, %v827
        %v835 = vadd.f32 %v816, %v818
        %v836 = vadd.f32 %v835, %v820
        %v837 = vadd.f32 %v836, %v822
        %v838 = vadd.f32 %v837, %v824
        %v839 = vadd.f32 %v838, %v826
        %v840 = vadd.f32 %v839, %v828
        %v841 = vmul.f32 %v801, %v801
        %v842 = vmul.f32 %v802, %v802
        %v843 = vmul.f32 %v803, %v803
        %v844 = vmul.f32 %v804, %v804
        %v845 = vmul.f32 %v805, %v805
        %v846 = vmul.f32 %v806, %v806
        %v847 = vmul.f32 %v807, %v807
        %v848 = vmul.f32 %v808, %v808
        %v849 = vmul.f32 %v809, %v809
        %v850 = vmul.f32 %v810, %v810
        %v851 = vmul.f32 %v811, %v811
        %v852 = vmul.f32 %v812, %v812
        %v853 = vmul.f32 %v813, %v813
        %v854 = vmul.f32 %v814, %v814
        %v855 = vadd.f32 %v841, %v843
        %v856 = vadd.f32 %v855, %v845
        %v857 = vadd.f32 %v856, %v847
        %v858 = vadd.f32 %v857, %v849
        %v859 = vadd.f32 %v858, %v851
        %v860 = vadd.f32 %v859, %v853
        %v861 = vadd.f32 %v842, %v844
        %v862 = vadd.f32 %v861, %v846
        %v863 = vadd.f32 %v862, %v848
        %v864 = vadd.f32 %v863, %v850
        %v865 = vadd.f32 %v864, %v852
        %v866 = vadd.f32 %v865, %v854
        %v867 = vadd.f32 %v834, %v840
        %v868 = vrot.slane %v867, 4
        %v869 = vadd.f32 %v867, %v868
        %v870 = vrot.slane %v869, 2
        %v871 = vadd.f32 %v869, %v870
        %v872 = vrot.slane %v871, 1
        %v873 = vadd.f32 %v871, %v872
        %874 = vst [vmem:[%s203] sm:$0x1] %v873
        %v875 = vadd.f32 %v860, %v866
        %v876 = vrot.slane %v875, 4
        %v877 = vadd.f32 %v875, %v876
        %v878 = vrot.slane %v877, 2
        %v879 = vadd.f32 %v877, %v878
        %v880 = vrot.slane %v879, 1
        %v881 = vadd.f32 %v879, %v880
        %882 = vst [vmem:[%s203 + $0xd] sm:$0x1] %v881
        %v883 = vsub.f32 %v437, %v204
        %v884 = vsub.f32 %v483, %v205
        %v885 = vsub.f32 %v440, %v206
        %v886 = vsub.f32 %v484, %v207
        %v887 = vsub.f32 %v443, %v208
        %v888 = vsub.f32 %v485, %v209
        %v889 = vsub.f32 %v446, %v210
        %v890 = vsub.f32 %v486, %v211
        %v891 = vsub.f32 %v449, %v212
        %v892 = vsub.f32 %v487, %v213
        %v893 = vsub.f32 %v452, %v214
        %v894 = vsub.f32 %v488, %v215
        %v895 = vsub.f32 %v455, %v216
        %v896 = vsub.f32 %v489, %v217
        %v897 = vsub.f32 %v458, %v218
        %v898 = vsub.f32 %v490, %v219
        %v899 = vsub.f32 %v613, %v220
        %v900 = vsub.f32 %v659, %v221
        %v901 = vsub.f32 %v616, %v222
        %v902 = vsub.f32 %v660, %v223
        %v903 = vsub.f32 %v619, %v224
        %v904 = vsub.f32 %v661, %v225
        %v905 = vsub.f32 %v622, %v226
        %v906 = vsub.f32 %v662, %v227
        %v907 = vsub.f32 %v625, %v228
        %v908 = vsub.f32 %v663, %v229
        %v909 = vsub.f32 %v628, %v230
        %v910 = vsub.f32 %v664, %v231
        %v911 = vsub.f32 %v631, %v232
        %v912 = vsub.f32 %v665, %v233
        %v913 = vsub.f32 %v634, %v234
        %v914 = vsub.f32 %v666, %v235
        %v915 = vmul.f32 %v883, %v899
        %v916 = vmul.f32 %v884, %v900
        %v917 = vmul.f32 %v885, %v901
        %v918 = vmul.f32 %v886, %v902
        %v919 = vmul.f32 %v887, %v903
        %v920 = vmul.f32 %v888, %v904
        %v921 = vmul.f32 %v889, %v905
        %v922 = vmul.f32 %v890, %v906
        %v923 = vmul.f32 %v891, %v907
        %v924 = vmul.f32 %v892, %v908
        %v925 = vmul.f32 %v893, %v909
        %v926 = vmul.f32 %v894, %v910
        %v927 = vmul.f32 %v895, %v911
        %v928 = vmul.f32 %v896, %v912
        %v929 = vmul.f32 %v897, %v913
        %v930 = vmul.f32 %v898, %v914
        %v931 = vadd.f32 %v915, %v917
        %v932 = vadd.f32 %v931, %v919
        %v933 = vadd.f32 %v932, %v921
        %v934 = vadd.f32 %v933, %v923
        %v935 = vadd.f32 %v934, %v925
        %v936 = vadd.f32 %v935, %v927
        %v937 = vadd.f32 %v936, %v929
        %v938 = vadd.f32 %v916, %v918
        %v939 = vadd.f32 %v938, %v920
        %v940 = vadd.f32 %v939, %v922
        %v941 = vadd.f32 %v940, %v924
        %v942 = vadd.f32 %v941, %v926
        %v943 = vadd.f32 %v942, %v928
        %v944 = vadd.f32 %v943, %v930
        %v945 = vmul.f32 %v899, %v899
        %v946 = vmul.f32 %v900, %v900
        %v947 = vmul.f32 %v901, %v901
        %v948 = vmul.f32 %v902, %v902
        %v949 = vmul.f32 %v903, %v903
        %v950 = vmul.f32 %v904, %v904
        %v951 = vmul.f32 %v905, %v905
        %v952 = vmul.f32 %v906, %v906
        %v953 = vmul.f32 %v907, %v907
        %v954 = vmul.f32 %v908, %v908
        %v955 = vmul.f32 %v909, %v909
        %v956 = vmul.f32 %v910, %v910
        %v957 = vmul.f32 %v911, %v911
        %v958 = vmul.f32 %v912, %v912
        %v959 = vmul.f32 %v913, %v913
        %v960 = vmul.f32 %v914, %v914
        %v961 = vadd.f32 %v945, %v947
        %v962 = vadd.f32 %v961, %v949
        %v963 = vadd.f32 %v962, %v951
        %v964 = vadd.f32 %v963, %v953
        %v965 = vadd.f32 %v964, %v955
        %v966 = vadd.f32 %v965, %v957
        %v967 = vadd.f32 %v966, %v959
        %v968 = vadd.f32 %v946, %v948
        %v969 = vadd.f32 %v968, %v950
        %v970 = vadd.f32 %v969, %v952
        %v971 = vadd.f32 %v970, %v954
        %v972 = vadd.f32 %v971, %v956
        %v973 = vadd.f32 %v972, %v958
        %v974 = vadd.f32 %v973, %v960
        %v975 = vmul.f32 %v937, %v783
        %v976 = vmul.f32 %v944, %v784
        %v977 = vmul.f32 %v967, %v783
        %v978 = vmul.f32 %v974, %v784
        %v979 = vadd.f32 %v975, %v976
        %v980 = vrot.slane %v979, 4
        %v981 = vadd.f32 %v979, %v980
        %v982 = vrot.slane %v981, 2
        %v983 = vadd.f32 %v981, %v982
        %v984 = vrot.slane %v983, 1
        %v985 = vadd.f32 %v983, %v984
        %986 = vst [vmem:[%s203 + $0x1] sm:$0x1] %v985
        %v987 = vadd.f32 %v977, %v978
        %v988 = vrot.slane %v987, 4
        %v989 = vadd.f32 %v987, %v988
        %v990 = vrot.slane %v989, 2
        %v991 = vadd.f32 %v989, %v990
        %v992 = vrot.slane %v991, 1
        %v993 = vadd.f32 %v991, %v992
        %994 = vst [vmem:[%s203 + $0xe] sm:$0x1] %v993
        %v995 = vsub.f32 %v492, %v204
        %v996 = vsub.f32 %v494, %v205
        %v997 = vsub.f32 %v496, %v206
        %v998 = vsub.f32 %v498, %v207
        %v999 = vsub.f32 %v500, %v208
        %v1000 = vsub.f32 %v502, %v209
        %v1001 = vsub.f32 %v504, %v210
        %v1002 = vsub.f32 %v506, %v211
        %v1003 = vsub.f32 %v508, %v212
        %v1004 = vsub.f32 %v510, %v213
        %v1005 = vsub.f32 %v512, %v214
        %v1006 = vsub.f32 %v514, %v215
        %v1007 = vsub.f32 %v516, %v216
        %v1008 = vsub.f32 %v518, %v217
        %v1009 = vsub.f32 %v520, %v218
        %v1010 = vsub.f32 %v522, %v219
        %v1011 = vsub.f32 %v668, %v220
        %v1012 = vsub.f32 %v670, %v221
        %v1013 = vsub.f32 %v672, %v222
        %v1014 = vsub.f32 %v674, %v223
        %v1015 = vsub.f32 %v676, %v224
        %v1016 = vsub.f32 %v678, %v225
        %v1017 = vsub.f32 %v680, %v226
        %v1018 = vsub.f32 %v682, %v227
        %v1019 = vsub.f32 %v684, %v228
        %v1020 = vsub.f32 %v686, %v229
        %v1021 = vsub.f32 %v688, %v230
        %v1022 = vsub.f32 %v690, %v231
        %v1023 = vsub.f32 %v692, %v232
        %v1024 = vsub.f32 %v694, %v233
        %v1025 = vsub.f32 %v696, %v234
        %v1026 = vsub.f32 %v698, %v235
        %v1027 = vmul.f32 %v995, %v1011
        %v1028 = vmul.f32 %v996, %v1012
        %v1029 = vmul.f32 %v997, %v1013
        %v1030 = vmul.f32 %v998, %v1014
        %v1031 = vmul.f32 %v999, %v1015
        %v1032 = vmul.f32 %v1000, %v1016
        %v1033 = vmul.f32 %v1001, %v1017
        %v1034 = vmul.f32 %v1002, %v1018
        %v1035 = vmul.f32 %v1003, %v1019
        %v1036 = vmul.f32 %v1004, %v1020
        %v1037 = vmul.f32 %v1005, %v1021
        %v1038 = vmul.f32 %v1006, %v1022
        %v1039 = vmul.f32 %v1007, %v1023
        %v1040 = vmul.f32 %v1008, %v1024
        %v1041 = vmul.f32 %v1009, %v1025
        %v1042 = vmul.f32 %v1010, %v1026
        %v1043 = vadd.f32 %v1027, %v1029
        %v1044 = vadd.f32 %v1043, %v1031
        %v1045 = vadd.f32 %v1044, %v1033
        %v1046 = vadd.f32 %v1045, %v1035
        %v1047 = vadd.f32 %v1046, %v1037
        %v1048 = vadd.f32 %v1047, %v1039
        %v1049 = vadd.f32 %v1048, %v1041
        %v1050 = vadd.f32 %v1028, %v1030
        %v1051 = vadd.f32 %v1050, %v1032
        %v1052 = vadd.f32 %v1051, %v1034
        %v1053 = vadd.f32 %v1052, %v1036
        %v1054 = vadd.f32 %v1053, %v1038
        %v1055 = vadd.f32 %v1054, %v1040
        %v1056 = vadd.f32 %v1055, %v1042
        %v1057 = vmul.f32 %v1011, %v1011
        %v1058 = vmul.f32 %v1012, %v1012
        %v1059 = vmul.f32 %v1013, %v1013
        %v1060 = vmul.f32 %v1014, %v1014
        %v1061 = vmul.f32 %v1015, %v1015
        %v1062 = vmul.f32 %v1016, %v1016
        %v1063 = vmul.f32 %v1017, %v1017
        %v1064 = vmul.f32 %v1018, %v1018
        %v1065 = vmul.f32 %v1019, %v1019
        %v1066 = vmul.f32 %v1020, %v1020
        %v1067 = vmul.f32 %v1021, %v1021
        %v1068 = vmul.f32 %v1022, %v1022
        %v1069 = vmul.f32 %v1023, %v1023
        %v1070 = vmul.f32 %v1024, %v1024
        %v1071 = vmul.f32 %v1025, %v1025
        %v1072 = vmul.f32 %v1026, %v1026
        %v1073 = vadd.f32 %v1057, %v1059
        %v1074 = vadd.f32 %v1073, %v1061
        %v1075 = vadd.f32 %v1074, %v1063
        %v1076 = vadd.f32 %v1075, %v1065
        %v1077 = vadd.f32 %v1076, %v1067
        %v1078 = vadd.f32 %v1077, %v1069
        %v1079 = vadd.f32 %v1078, %v1071
        %v1080 = vadd.f32 %v1058, %v1060
        %v1081 = vadd.f32 %v1080, %v1062
        %v1082 = vadd.f32 %v1081, %v1064
        %v1083 = vadd.f32 %v1082, %v1066
        %v1084 = vadd.f32 %v1083, %v1068
        %v1085 = vadd.f32 %v1084, %v1070
        %v1086 = vadd.f32 %v1085, %v1072
        %v1087 = vmul.f32 %v1049, %v778
        %v1088 = vmul.f32 %v1056, %v778
        %v1089 = vmul.f32 %v1079, %v778
        %v1090 = vmul.f32 %v1086, %v778
        %v1091 = vadd.f32 %v1087, %v1088
        %v1092 = vrot.slane %v1091, 4
        %v1093 = vadd.f32 %v1091, %v1092
        %v1094 = vrot.slane %v1093, 2
        %v1095 = vadd.f32 %v1093, %v1094
        %v1096 = vrot.slane %v1095, 1
        %v1097 = vadd.f32 %v1095, %v1096
        %1098 = vst [vmem:[%s203 + $0x2] sm:$0x1] %v1097
        %v1099 = vadd.f32 %v1089, %v1090
        %v1100 = vrot.slane %v1099, 4
        %v1101 = vadd.f32 %v1099, %v1100
        %v1102 = vrot.slane %v1101, 2
        %v1103 = vadd.f32 %v1101, %v1102
        %v1104 = vrot.slane %v1103, 1
        %v1105 = vadd.f32 %v1103, %v1104
        %1106 = vst [vmem:[%s203 + $0xf] sm:$0x1] %v1105
        %v1107 = vsub.f32 %v440, %v204
        %v1108 = vsub.f32 %v484, %v205
        %v1109 = vsub.f32 %v443, %v206
        %v1110 = vsub.f32 %v485, %v207
        %v1111 = vsub.f32 %v446, %v208
        %v1112 = vsub.f32 %v486, %v209
        %v1113 = vsub.f32 %v449, %v210
        %v1114 = vsub.f32 %v487, %v211
        %v1115 = vsub.f32 %v452, %v212
        %v1116 = vsub.f32 %v488, %v213
        %v1117 = vsub.f32 %v455, %v214
        %v1118 = vsub.f32 %v489, %v215
        %v1119 = vsub.f32 %v458, %v216
        %v1120 = vsub.f32 %v490, %v217
        %v1121 = vsub.f32 %v616, %v220
        %v1122 = vsub.f32 %v660, %v221
        %v1123 = vsub.f32 %v619, %v222
        %v1124 = vsub.f32 %v661, %v223
        %v1125 = vsub.f32 %v622, %v224
        %v1126 = vsub.f32 %v662, %v225
        %v1127 = vsub.f32 %v625, %v226
        %v1128 = vsub.f32 %v663, %v227
        %v1129 = vsub.f32 %v628, %v228
        %v1130 = vsub.f32 %v664, %v229
        %v1131 = vsub.f32 %v631, %v230
        %v1132 = vsub.f32 %v665, %v231
        %v1133 = vsub.f32 %v634, %v232
        %v1134 = vsub.f32 %v666, %v233
        %v1135 = vmul.f32 %v1107, %v1121
        %v1136 = vmul.f32 %v1108, %v1122
        %v1137 = vmul.f32 %v1109, %v1123
        %v1138 = vmul.f32 %v1110, %v1124
        %v1139 = vmul.f32 %v1111, %v1125
        %v1140 = vmul.f32 %v1112, %v1126
        %v1141 = vmul.f32 %v1113, %v1127
        %v1142 = vmul.f32 %v1114, %v1128
        %v1143 = vmul.f32 %v1115, %v1129
        %v1144 = vmul.f32 %v1116, %v1130
        %v1145 = vmul.f32 %v1117, %v1131
        %v1146 = vmul.f32 %v1118, %v1132
        %v1147 = vmul.f32 %v1119, %v1133
        %v1148 = vmul.f32 %v1120, %v1134
        %v1149 = vadd.f32 %v1135, %v1137
        %v1150 = vadd.f32 %v1149, %v1139
        %v1151 = vadd.f32 %v1150, %v1141
        %v1152 = vadd.f32 %v1151, %v1143
        %v1153 = vadd.f32 %v1152, %v1145
        %v1154 = vadd.f32 %v1153, %v1147
        %v1155 = vadd.f32 %v1136, %v1138
        %v1156 = vadd.f32 %v1155, %v1140
        %v1157 = vadd.f32 %v1156, %v1142
        %v1158 = vadd.f32 %v1157, %v1144
        %v1159 = vadd.f32 %v1158, %v1146
        %v1160 = vadd.f32 %v1159, %v1148
        %v1161 = vmul.f32 %v1121, %v1121
        %v1162 = vmul.f32 %v1122, %v1122
        %v1163 = vmul.f32 %v1123, %v1123
        %v1164 = vmul.f32 %v1124, %v1124
        %v1165 = vmul.f32 %v1125, %v1125
        %v1166 = vmul.f32 %v1126, %v1126
        %v1167 = vmul.f32 %v1127, %v1127
        %v1168 = vmul.f32 %v1128, %v1128
        %v1169 = vmul.f32 %v1129, %v1129
        %v1170 = vmul.f32 %v1130, %v1130
        %v1171 = vmul.f32 %v1131, %v1131
        %v1172 = vmul.f32 %v1132, %v1132
        %v1173 = vmul.f32 %v1133, %v1133
        %v1174 = vmul.f32 %v1134, %v1134
        %v1175 = vadd.f32 %v1161, %v1163
        %v1176 = vadd.f32 %v1175, %v1165
        %v1177 = vadd.f32 %v1176, %v1167
        %v1178 = vadd.f32 %v1177, %v1169
        %v1179 = vadd.f32 %v1178, %v1171
        %v1180 = vadd.f32 %v1179, %v1173
        %v1181 = vadd.f32 %v1162, %v1164
        %v1182 = vadd.f32 %v1181, %v1166
        %v1183 = vadd.f32 %v1182, %v1168
        %v1184 = vadd.f32 %v1183, %v1170
        %v1185 = vadd.f32 %v1184, %v1172
        %v1186 = vadd.f32 %v1185, %v1174
        %v1187 = vmul.f32 %v1154, %v783
        %v1188 = vmul.f32 %v1160, %v784
        %v1189 = vmul.f32 %v1180, %v783
        %v1190 = vmul.f32 %v1186, %v784
        %v1191 = vadd.f32 %v1187, %v1188
        %v1192 = vrot.slane %v1191, 4
        %v1193 = vadd.f32 %v1191, %v1192
        %v1194 = vrot.slane %v1193, 2
        %v1195 = vadd.f32 %v1193, %v1194
        %v1196 = vrot.slane %v1195, 1
        %v1197 = vadd.f32 %v1195, %v1196
        %1198 = vst [vmem:[%s203 + $0x3] sm:$0x1] %v1197
        %v1199 = vadd.f32 %v1189, %v1190
        %v1200 = vrot.slane %v1199, 4
        %v1201 = vadd.f32 %v1199, %v1200
        %v1202 = vrot.slane %v1201, 2
        %v1203 = vadd.f32 %v1201, %v1202
        %v1204 = vrot.slane %v1203, 1
        %v1205 = vadd.f32 %v1203, %v1204
        %1206 = vst [vmem:[%s203 + $0x10] sm:$0x1] %v1205
        %v1207 = vsub.f32 %v206, %v437
        %v1208 = vsub.f32 %v207, %v483
        %v1209 = vsub.f32 %v208, %v440
        %v1210 = vsub.f32 %v209, %v484
        %v1211 = vsub.f32 %v210, %v443
        %v1212 = vsub.f32 %v211, %v485
        %v1213 = vsub.f32 %v212, %v446
        %v1214 = vsub.f32 %v213, %v486
        %v1215 = vsub.f32 %v214, %v449
        %v1216 = vsub.f32 %v215, %v487
        %v1217 = vsub.f32 %v216, %v452
        %v1218 = vsub.f32 %v217, %v488
        %v1219 = vsub.f32 %v218, %v455
        %v1220 = vsub.f32 %v219, %v489
        %v1221 = vsub.f32 %v222, %v613
        %v1222 = vsub.f32 %v223, %v659
        %v1223 = vsub.f32 %v224, %v616
        %v1224 = vsub.f32 %v225, %v660
        %v1225 = vsub.f32 %v226, %v619
        %v1226 = vsub.f32 %v227, %v661
        %v1227 = vsub.f32 %v228, %v622
        %v1228 = vsub.f32 %v229, %v662
        %v1229 = vsub.f32 %v230, %v625
        %v1230 = vsub.f32 %v231, %v663
        %v1231 = vsub.f32 %v232, %v628
        %v1232 = vsub.f32 %v233, %v664
        %v1233 = vsub.f32 %v234, %v631
        %v1234 = vsub.f32 %v235, %v665
        %v1235 = vmul.f32 %v1207, %v1221
        %v1236 = vmul.f32 %v1208, %v1222
        %v1237 = vmul.f32 %v1209, %v1223
        %v1238 = vmul.f32 %v1210, %v1224
        %v1239 = vmul.f32 %v1211, %v1225
        %v1240 = vmul.f32 %v1212, %v1226
        %v1241 = vmul.f32 %v1213, %v1227
        %v1242 = vmul.f32 %v1214, %v1228
        %v1243 = vmul.f32 %v1215, %v1229
        %v1244 = vmul.f32 %v1216, %v1230
        %v1245 = vmul.f32 %v1217, %v1231
        %v1246 = vmul.f32 %v1218, %v1232
        %v1247 = vmul.f32 %v1219, %v1233
        %v1248 = vmul.f32 %v1220, %v1234
        %v1249 = vadd.f32 %v1235, %v1237
        %v1250 = vadd.f32 %v1249, %v1239
        %v1251 = vadd.f32 %v1250, %v1241
        %v1252 = vadd.f32 %v1251, %v1243
        %v1253 = vadd.f32 %v1252, %v1245
        %v1254 = vadd.f32 %v1253, %v1247
        %v1255 = vadd.f32 %v1236, %v1238
        %v1256 = vadd.f32 %v1255, %v1240
        %v1257 = vadd.f32 %v1256, %v1242
        %v1258 = vadd.f32 %v1257, %v1244
        %v1259 = vadd.f32 %v1258, %v1246
        %v1260 = vadd.f32 %v1259, %v1248
        %v1261 = vmul.f32 %v1221, %v1221
        %v1262 = vmul.f32 %v1222, %v1222
        %v1263 = vmul.f32 %v1223, %v1223
        %v1264 = vmul.f32 %v1224, %v1224
        %v1265 = vmul.f32 %v1225, %v1225
        %v1266 = vmul.f32 %v1226, %v1226
        %v1267 = vmul.f32 %v1227, %v1227
        %v1268 = vmul.f32 %v1228, %v1228
        %v1269 = vmul.f32 %v1229, %v1229
        %v1270 = vmul.f32 %v1230, %v1230
        %v1271 = vmul.f32 %v1231, %v1231
        %v1272 = vmul.f32 %v1232, %v1232
        %v1273 = vmul.f32 %v1233, %v1233
        %v1274 = vmul.f32 %v1234, %v1234
        %v1275 = vadd.f32 %v1261, %v1263
        %v1276 = vadd.f32 %v1275, %v1265
        %v1277 = vadd.f32 %v1276, %v1267
        %v1278 = vadd.f32 %v1277, %v1269
        %v1279 = vadd.f32 %v1278, %v1271
        %v1280 = vadd.f32 %v1279, %v1273
        %v1281 = vadd.f32 %v1262, %v1264
        %v1282 = vadd.f32 %v1281, %v1266
        %v1283 = vadd.f32 %v1282, %v1268
        %v1284 = vadd.f32 %v1283, %v1270
        %v1285 = vadd.f32 %v1284, %v1272
        %v1286 = vadd.f32 %v1285, %v1274
        %v1287 = vmul.f32 %v1254, %v783
        %v1288 = vmul.f32 %v1260, %v784
        %v1289 = vmul.f32 %v1280, %v783
        %v1290 = vmul.f32 %v1286, %v784
        %v1291 = vadd.f32 %v1287, %v1288
        %v1292 = vrot.slane %v1291, 4
        %v1293 = vadd.f32 %v1291, %v1292
        %v1294 = vrot.slane %v1293, 2
        %v1295 = vadd.f32 %v1293, %v1294
        %v1296 = vrot.slane %v1295, 1
        %v1297 = vadd.f32 %v1295, %v1296
        %1298 = vst [vmem:[%s203 + $0x4] sm:$0x1] %v1297
        %v1299 = vadd.f32 %v1289, %v1290
        %v1300 = vrot.slane %v1299, 4
        %v1301 = vadd.f32 %v1299, %v1300
        %v1302 = vrot.slane %v1301, 2
        %v1303 = vadd.f32 %v1301, %v1302
        %v1304 = vrot.slane %v1303, 1
        %v1305 = vadd.f32 %v1303, %v1304
        %1306 = vst [vmem:[%s203 + $0x11] sm:$0x1] %v1305
        %v1307 = vsub.f32 %v548, %v204
        %v1308 = vsub.f32 %v550, %v205
        %v1309 = vsub.f32 %v552, %v206
        %v1310 = vsub.f32 %v554, %v207
        %v1311 = vsub.f32 %v556, %v208
        %v1312 = vsub.f32 %v558, %v209
        %v1313 = vsub.f32 %v560, %v210
        %v1314 = vsub.f32 %v562, %v211
        %v1315 = vsub.f32 %v564, %v212
        %v1316 = vsub.f32 %v566, %v213
        %v1317 = vsub.f32 %v568, %v214
        %v1318 = vsub.f32 %v570, %v215
        %v1319 = vsub.f32 %v572, %v216
        %v1320 = vsub.f32 %v574, %v217
        %v1321 = vsub.f32 %v576, %v218
        %v1322 = vsub.f32 %v578, %v219
        %v1323 = vsub.f32 %v724, %v220
        %v1324 = vsub.f32 %v726, %v221
        %v1325 = vsub.f32 %v728, %v222
        %v1326 = vsub.f32 %v730, %v223
        %v1327 = vsub.f32 %v732, %v224
        %v1328 = vsub.f32 %v734, %v225
        %v1329 = vsub.f32 %v736, %v226
        %v1330 = vsub.f32 %v738, %v227
        %v1331 = vsub.f32 %v740, %v228
        %v1332 = vsub.f32 %v742, %v229
        %v1333 = vsub.f32 %v744, %v230
        %v1334 = vsub.f32 %v746, %v231
        %v1335 = vsub.f32 %v748, %v232
        %v1336 = vsub.f32 %v750, %v233
        %v1337 = vsub.f32 %v752, %v234
        %v1338 = vsub.f32 %v754, %v235
        %v1339 = vmul.f32 %v1307, %v1323
        %v1340 = vmul.f32 %v1308, %v1324
        %v1341 = vmul.f32 %v1309, %v1325
        %v1342 = vmul.f32 %v1310, %v1326
        %v1343 = vmul.f32 %v1311, %v1327
        %v1344 = vmul.f32 %v1312, %v1328
        %v1345 = vmul.f32 %v1313, %v1329
        %v1346 = vmul.f32 %v1314, %v1330
        %v1347 = vmul.f32 %v1315, %v1331
        %v1348 = vmul.f32 %v1316, %v1332
        %v1349 = vmul.f32 %v1317, %v1333
        %v1350 = vmul.f32 %v1318, %v1334
        %v1351 = vmul.f32 %v1319, %v1335
        %v1352 = vmul.f32 %v1320, %v1336
        %v1353 = vmul.f32 %v1321, %v1337
        %v1354 = vmul.f32 %v1322, %v1338
        %v1355 = vadd.f32 %v1339, %v1341
        %v1356 = vadd.f32 %v1355, %v1343
        %v1357 = vadd.f32 %v1356, %v1345
        %v1358 = vadd.f32 %v1357, %v1347
        %v1359 = vadd.f32 %v1358, %v1349
        %v1360 = vadd.f32 %v1359, %v1351
        %v1361 = vadd.f32 %v1360, %v1353
        %v1362 = vadd.f32 %v1340, %v1342
        %v1363 = vadd.f32 %v1362, %v1344
        %v1364 = vadd.f32 %v1363, %v1346
        %v1365 = vadd.f32 %v1364, %v1348
        %v1366 = vadd.f32 %v1365, %v1350
        %v1367 = vadd.f32 %v1366, %v1352
        %v1368 = vadd.f32 %v1367, %v1354
        %v1369 = vmul.f32 %v1323, %v1323
        %v1370 = vmul.f32 %v1324, %v1324
        %v1371 = vmul.f32 %v1325, %v1325
        %v1372 = vmul.f32 %v1326, %v1326
        %v1373 = vmul.f32 %v1327, %v1327
        %v1374 = vmul.f32 %v1328, %v1328
        %v1375 = vmul.f32 %v1329, %v1329
        %v1376 = vmul.f32 %v1330, %v1330
        %v1377 = vmul.f32 %v1331, %v1331
        %v1378 = vmul.f32 %v1332, %v1332
        %v1379 = vmul.f32 %v1333, %v1333
        %v1380 = vmul.f32 %v1334, %v1334
        %v1381 = vmul.f32 %v1335, %v1335
        %v1382 = vmul.f32 %v1336, %v1336
        %v1383 = vmul.f32 %v1337, %v1337
        %v1384 = vmul.f32 %v1338, %v1338
        %v1385 = vadd.f32 %v1369, %v1371
        %v1386 = vadd.f32 %v1385, %v1373
        %v1387 = vadd.f32 %v1386, %v1375
        %v1388 = vadd.f32 %v1387, %v1377
        %v1389 = vadd.f32 %v1388, %v1379
        %v1390 = vadd.f32 %v1389, %v1381
        %v1391 = vadd.f32 %v1390, %v1383
        %v1392 = vadd.f32 %v1370, %v1372
        %v1393 = vadd.f32 %v1392, %v1374
        %v1394 = vadd.f32 %v1393, %v1376
        %v1395 = vadd.f32 %v1394, %v1378
        %v1396 = vadd.f32 %v1395, %v1380
        %v1397 = vadd.f32 %v1396, %v1382
        %v1398 = vadd.f32 %v1397, %v1384
        %v1399 = vmul.f32 %v1361, %v785
        %v1400 = vmul.f32 %v1368, %v786
        %v1401 = vmul.f32 %v1391, %v785
        %v1402 = vmul.f32 %v1398, %v786
        %v1403 = vadd.f32 %v1399, %v1400
        %v1404 = vrot.slane %v1403, 4
        %v1405 = vadd.f32 %v1403, %v1404
        %v1406 = vrot.slane %v1405, 2
        %v1407 = vadd.f32 %v1405, %v1406
        %v1408 = vrot.slane %v1407, 1
        %v1409 = vadd.f32 %v1407, %v1408
        %1410 = vst [vmem:[%s203 + $0x5] sm:$0x1] %v1409
        %v1411 = vadd.f32 %v1401, %v1402
        %v1412 = vrot.slane %v1411, 4
        %v1413 = vadd.f32 %v1411, %v1412
        %v1414 = vrot.slane %v1413, 2
        %v1415 = vadd.f32 %v1413, %v1414
        %v1416 = vrot.slane %v1415, 1
        %v1417 = vadd.f32 %v1415, %v1416
        %1418 = vst [vmem:[%s203 + $0x12] sm:$0x1] %v1417
        %v1419 = vsub.f32 %v437, %v492
        %v1420 = vsub.f32 %v483, %v494
        %v1421 = vsub.f32 %v440, %v496
        %v1422 = vsub.f32 %v484, %v498
        %v1423 = vsub.f32 %v443, %v500
        %v1424 = vsub.f32 %v485, %v502
        %v1425 = vsub.f32 %v446, %v504
        %v1426 = vsub.f32 %v486, %v506
        %v1427 = vsub.f32 %v449, %v508
        %v1428 = vsub.f32 %v487, %v510
        %v1429 = vsub.f32 %v452, %v512
        %v1430 = vsub.f32 %v488, %v514
        %v1431 = vsub.f32 %v455, %v516
        %v1432 = vsub.f32 %v489, %v518
        %v1433 = vsub.f32 %v458, %v520
        %v1434 = vsub.f32 %v490, %v522
        %v1435 = vsub.f32 %v613, %v668
        %v1436 = vsub.f32 %v659, %v670
        %v1437 = vsub.f32 %v616, %v672
        %v1438 = vsub.f32 %v660, %v674
        %v1439 = vsub.f32 %v619, %v676
        %v1440 = vsub.f32 %v661, %v678
        %v1441 = vsub.f32 %v622, %v680
        %v1442 = vsub.f32 %v662, %v682
        %v1443 = vsub.f32 %v625, %v684
        %v1444 = vsub.f32 %v663, %v686
        %v1445 = vsub.f32 %v628, %v688
        %v1446 = vsub.f32 %v664, %v690
        %v1447 = vsub.f32 %v631, %v692
        %v1448 = vsub.f32 %v665, %v694
        %v1449 = vsub.f32 %v634, %v696
        %v1450 = vsub.f32 %v666, %v698
        %v1451 = vmul.f32 %v1419, %v1435
        %v1452 = vmul.f32 %v1420, %v1436
        %v1453 = vmul.f32 %v1421, %v1437
        %v1454 = vmul.f32 %v1422, %v1438
        %v1455 = vmul.f32 %v1423, %v1439
        %v1456 = vmul.f32 %v1424, %v1440
        %v1457 = vmul.f32 %v1425, %v1441
        %v1458 = vmul.f32 %v1426, %v1442
        %v1459 = vmul.f32 %v1427, %v1443
        %v1460 = vmul.f32 %v1428, %v1444
        %v1461 = vmul.f32 %v1429, %v1445
        %v1462 = vmul.f32 %v1430, %v1446
        %v1463 = vmul.f32 %v1431, %v1447
        %v1464 = vmul.f32 %v1432, %v1448
        %v1465 = vmul.f32 %v1433, %v1449
        %v1466 = vmul.f32 %v1434, %v1450
        %v1467 = vadd.f32 %v1451, %v1453
        %v1468 = vadd.f32 %v1467, %v1455
        %v1469 = vadd.f32 %v1468, %v1457
        %v1470 = vadd.f32 %v1469, %v1459
        %v1471 = vadd.f32 %v1470, %v1461
        %v1472 = vadd.f32 %v1471, %v1463
        %v1473 = vadd.f32 %v1472, %v1465
        %v1474 = vadd.f32 %v1452, %v1454
        %v1475 = vadd.f32 %v1474, %v1456
        %v1476 = vadd.f32 %v1475, %v1458
        %v1477 = vadd.f32 %v1476, %v1460
        %v1478 = vadd.f32 %v1477, %v1462
        %v1479 = vadd.f32 %v1478, %v1464
        %v1480 = vadd.f32 %v1479, %v1466
        %v1481 = vmul.f32 %v1435, %v1435
        %v1482 = vmul.f32 %v1436, %v1436
        %v1483 = vmul.f32 %v1437, %v1437
        %v1484 = vmul.f32 %v1438, %v1438
        %v1485 = vmul.f32 %v1439, %v1439
        %v1486 = vmul.f32 %v1440, %v1440
        %v1487 = vmul.f32 %v1441, %v1441
        %v1488 = vmul.f32 %v1442, %v1442
        %v1489 = vmul.f32 %v1443, %v1443
        %v1490 = vmul.f32 %v1444, %v1444
        %v1491 = vmul.f32 %v1445, %v1445
        %v1492 = vmul.f32 %v1446, %v1446
        %v1493 = vmul.f32 %v1447, %v1447
        %v1494 = vmul.f32 %v1448, %v1448
        %v1495 = vmul.f32 %v1449, %v1449
        %v1496 = vmul.f32 %v1450, %v1450
        %v1497 = vadd.f32 %v1481, %v1483
        %v1498 = vadd.f32 %v1497, %v1485
        %v1499 = vadd.f32 %v1498, %v1487
        %v1500 = vadd.f32 %v1499, %v1489
        %v1501 = vadd.f32 %v1500, %v1491
        %v1502 = vadd.f32 %v1501, %v1493
        %v1503 = vadd.f32 %v1502, %v1495
        %v1504 = vadd.f32 %v1482, %v1484
        %v1505 = vadd.f32 %v1504, %v1486
        %v1506 = vadd.f32 %v1505, %v1488
        %v1507 = vadd.f32 %v1506, %v1490
        %v1508 = vadd.f32 %v1507, %v1492
        %v1509 = vadd.f32 %v1508, %v1494
        %v1510 = vadd.f32 %v1509, %v1496
        %v1511 = vmul.f32 %v1473, %v785
        %v1512 = vmul.f32 %v1480, %v786
        %v1513 = vmul.f32 %v1503, %v785
        %v1514 = vmul.f32 %v1510, %v786
        %v1515 = vadd.f32 %v1511, %v1512
        %v1516 = vrot.slane %v1515, 4
        %v1517 = vadd.f32 %v1515, %v1516
        %v1518 = vrot.slane %v1517, 2
        %v1519 = vadd.f32 %v1517, %v1518
        %v1520 = vrot.slane %v1519, 1
        %v1521 = vadd.f32 %v1519, %v1520
        %1522 = vst [vmem:[%s203 + $0x6] sm:$0x1] %v1521
        %v1523 = vadd.f32 %v1513, %v1514
        %v1524 = vrot.slane %v1523, 4
        %v1525 = vadd.f32 %v1523, %v1524
        %v1526 = vrot.slane %v1525, 2
        %v1527 = vadd.f32 %v1525, %v1526
        %v1528 = vrot.slane %v1527, 1
        %v1529 = vadd.f32 %v1527, %v1528
        %1530 = vst [vmem:[%s203 + $0x13] sm:$0x1] %v1529
        %v1531 = vsub.f32 %v206, %v492
        %v1532 = vsub.f32 %v207, %v494
        %v1533 = vsub.f32 %v208, %v496
        %v1534 = vsub.f32 %v209, %v498
        %v1535 = vsub.f32 %v210, %v500
        %v1536 = vsub.f32 %v211, %v502
        %v1537 = vsub.f32 %v212, %v504
        %v1538 = vsub.f32 %v213, %v506
        %v1539 = vsub.f32 %v214, %v508
        %v1540 = vsub.f32 %v215, %v510
        %v1541 = vsub.f32 %v216, %v512
        %v1542 = vsub.f32 %v217, %v514
        %v1543 = vsub.f32 %v218, %v516
        %v1544 = vsub.f32 %v219, %v518
        %v1545 = vsub.f32 %v222, %v668
        %v1546 = vsub.f32 %v223, %v670
        %v1547 = vsub.f32 %v224, %v672
        %v1548 = vsub.f32 %v225, %v674
        %v1549 = vsub.f32 %v226, %v676
        %v1550 = vsub.f32 %v227, %v678
        %v1551 = vsub.f32 %v228, %v680
        %v1552 = vsub.f32 %v229, %v682
        %v1553 = vsub.f32 %v230, %v684
        %v1554 = vsub.f32 %v231, %v686
        %v1555 = vsub.f32 %v232, %v688
        %v1556 = vsub.f32 %v233, %v690
        %v1557 = vsub.f32 %v234, %v692
        %v1558 = vsub.f32 %v235, %v694
        %v1559 = vmul.f32 %v1531, %v1545
        %v1560 = vmul.f32 %v1532, %v1546
        %v1561 = vmul.f32 %v1533, %v1547
        %v1562 = vmul.f32 %v1534, %v1548
        %v1563 = vmul.f32 %v1535, %v1549
        %v1564 = vmul.f32 %v1536, %v1550
        %v1565 = vmul.f32 %v1537, %v1551
        %v1566 = vmul.f32 %v1538, %v1552
        %v1567 = vmul.f32 %v1539, %v1553
        %v1568 = vmul.f32 %v1540, %v1554
        %v1569 = vmul.f32 %v1541, %v1555
        %v1570 = vmul.f32 %v1542, %v1556
        %v1571 = vmul.f32 %v1543, %v1557
        %v1572 = vmul.f32 %v1544, %v1558
        %v1573 = vadd.f32 %v1559, %v1561
        %v1574 = vadd.f32 %v1573, %v1563
        %v1575 = vadd.f32 %v1574, %v1565
        %v1576 = vadd.f32 %v1575, %v1567
        %v1577 = vadd.f32 %v1576, %v1569
        %v1578 = vadd.f32 %v1577, %v1571
        %v1579 = vadd.f32 %v1560, %v1562
        %v1580 = vadd.f32 %v1579, %v1564
        %v1581 = vadd.f32 %v1580, %v1566
        %v1582 = vadd.f32 %v1581, %v1568
        %v1583 = vadd.f32 %v1582, %v1570
        %v1584 = vadd.f32 %v1583, %v1572
        %v1585 = vmul.f32 %v1545, %v1545
        %v1586 = vmul.f32 %v1546, %v1546
        %v1587 = vmul.f32 %v1547, %v1547
        %v1588 = vmul.f32 %v1548, %v1548
        %v1589 = vmul.f32 %v1549, %v1549
        %v1590 = vmul.f32 %v1550, %v1550
        %v1591 = vmul.f32 %v1551, %v1551
        %v1592 = vmul.f32 %v1552, %v1552
        %v1593 = vmul.f32 %v1553, %v1553
        %v1594 = vmul.f32 %v1554, %v1554
        %v1595 = vmul.f32 %v1555, %v1555
        %v1596 = vmul.f32 %v1556, %v1556
        %v1597 = vmul.f32 %v1557, %v1557
        %v1598 = vmul.f32 %v1558, %v1558
        %v1599 = vadd.f32 %v1585, %v1587
        %v1600 = vadd.f32 %v1599, %v1589
        %v1601 = vadd.f32 %v1600, %v1591
        %v1602 = vadd.f32 %v1601, %v1593
        %v1603 = vadd.f32 %v1602, %v1595
        %v1604 = vadd.f32 %v1603, %v1597
        %v1605 = vadd.f32 %v1586, %v1588
        %v1606 = vadd.f32 %v1605, %v1590
        %v1607 = vadd.f32 %v1606, %v1592
        %v1608 = vadd.f32 %v1607, %v1594
        %v1609 = vadd.f32 %v1608, %v1596
        %v1610 = vadd.f32 %v1609, %v1598
        %v1611 = vmul.f32 %v1578, %v778
        %v1612 = vmul.f32 %v1584, %v778
        %v1613 = vmul.f32 %v1604, %v778
        %v1614 = vmul.f32 %v1610, %v778
        %v1615 = vadd.f32 %v1611, %v1612
        %v1616 = vrot.slane %v1615, 4
        %v1617 = vadd.f32 %v1615, %v1616
        %v1618 = vrot.slane %v1617, 2
        %v1619 = vadd.f32 %v1617, %v1618
        %v1620 = vrot.slane %v1619, 1
        %v1621 = vadd.f32 %v1619, %v1620
        %1622 = vst [vmem:[%s203 + $0x7] sm:$0x1] %v1621
        %v1623 = vadd.f32 %v1613, %v1614
        %v1624 = vrot.slane %v1623, 4
        %v1625 = vadd.f32 %v1623, %v1624
        %v1626 = vrot.slane %v1625, 2
        %v1627 = vadd.f32 %v1625, %v1626
        %v1628 = vrot.slane %v1627, 1
        %v1629 = vadd.f32 %v1627, %v1628
        %1630 = vst [vmem:[%s203 + $0x14] sm:$0x1] %v1629
        %v1631 = vsub.f32 %v496, %v204
        %v1632 = vsub.f32 %v498, %v205
        %v1633 = vsub.f32 %v500, %v206
        %v1634 = vsub.f32 %v502, %v207
        %v1635 = vsub.f32 %v504, %v208
        %v1636 = vsub.f32 %v506, %v209
        %v1637 = vsub.f32 %v508, %v210
        %v1638 = vsub.f32 %v510, %v211
        %v1639 = vsub.f32 %v512, %v212
        %v1640 = vsub.f32 %v514, %v213
        %v1641 = vsub.f32 %v516, %v214
        %v1642 = vsub.f32 %v518, %v215
        %v1643 = vsub.f32 %v520, %v216
        %v1644 = vsub.f32 %v522, %v217
        %v1645 = vsub.f32 %v672, %v220
        %v1646 = vsub.f32 %v674, %v221
        %v1647 = vsub.f32 %v676, %v222
        %v1648 = vsub.f32 %v678, %v223
        %v1649 = vsub.f32 %v680, %v224
        %v1650 = vsub.f32 %v682, %v225
        %v1651 = vsub.f32 %v684, %v226
        %v1652 = vsub.f32 %v686, %v227
        %v1653 = vsub.f32 %v688, %v228
        %v1654 = vsub.f32 %v690, %v229
        %v1655 = vsub.f32 %v692, %v230
        %v1656 = vsub.f32 %v694, %v231
        %v1657 = vsub.f32 %v696, %v232
        %v1658 = vsub.f32 %v698, %v233
        %v1659 = vmul.f32 %v1631, %v1645
        %v1660 = vmul.f32 %v1632, %v1646
        %v1661 = vmul.f32 %v1633, %v1647
        %v1662 = vmul.f32 %v1634, %v1648
        %v1663 = vmul.f32 %v1635, %v1649
        %v1664 = vmul.f32 %v1636, %v1650
        %v1665 = vmul.f32 %v1637, %v1651
        %v1666 = vmul.f32 %v1638, %v1652
        %v1667 = vmul.f32 %v1639, %v1653
        %v1668 = vmul.f32 %v1640, %v1654
        %v1669 = vmul.f32 %v1641, %v1655
        %v1670 = vmul.f32 %v1642, %v1656
        %v1671 = vmul.f32 %v1643, %v1657
        %v1672 = vmul.f32 %v1644, %v1658
        %v1673 = vadd.f32 %v1659, %v1661
        %v1674 = vadd.f32 %v1673, %v1663
        %v1675 = vadd.f32 %v1674, %v1665
        %v1676 = vadd.f32 %v1675, %v1667
        %v1677 = vadd.f32 %v1676, %v1669
        %v1678 = vadd.f32 %v1677, %v1671
        %v1679 = vadd.f32 %v1660, %v1662
        %v1680 = vadd.f32 %v1679, %v1664
        %v1681 = vadd.f32 %v1680, %v1666
        %v1682 = vadd.f32 %v1681, %v1668
        %v1683 = vadd.f32 %v1682, %v1670
        %v1684 = vadd.f32 %v1683, %v1672
        %v1685 = vmul.f32 %v1645, %v1645
        %v1686 = vmul.f32 %v1646, %v1646
        %v1687 = vmul.f32 %v1647, %v1647
        %v1688 = vmul.f32 %v1648, %v1648
        %v1689 = vmul.f32 %v1649, %v1649
        %v1690 = vmul.f32 %v1650, %v1650
        %v1691 = vmul.f32 %v1651, %v1651
        %v1692 = vmul.f32 %v1652, %v1652
        %v1693 = vmul.f32 %v1653, %v1653
        %v1694 = vmul.f32 %v1654, %v1654
        %v1695 = vmul.f32 %v1655, %v1655
        %v1696 = vmul.f32 %v1656, %v1656
        %v1697 = vmul.f32 %v1657, %v1657
        %v1698 = vmul.f32 %v1658, %v1658
        %v1699 = vadd.f32 %v1685, %v1687
        %v1700 = vadd.f32 %v1699, %v1689
        %v1701 = vadd.f32 %v1700, %v1691
        %v1702 = vadd.f32 %v1701, %v1693
        %v1703 = vadd.f32 %v1702, %v1695
        %v1704 = vadd.f32 %v1703, %v1697
        %v1705 = vadd.f32 %v1686, %v1688
        %v1706 = vadd.f32 %v1705, %v1690
        %v1707 = vadd.f32 %v1706, %v1692
        %v1708 = vadd.f32 %v1707, %v1694
        %v1709 = vadd.f32 %v1708, %v1696
        %v1710 = vadd.f32 %v1709, %v1698
        %v1711 = vmul.f32 %v1678, %v778
        %v1712 = vmul.f32 %v1684, %v778
        %v1713 = vmul.f32 %v1704, %v778
        %v1714 = vmul.f32 %v1710, %v778
        %v1715 = vadd.f32 %v1711, %v1712
        %v1716 = vrot.slane %v1715, 4
        %v1717 = vadd.f32 %v1715, %v1716
        %v1718 = vrot.slane %v1717, 2
        %v1719 = vadd.f32 %v1717, %v1718
        %v1720 = vrot.slane %v1719, 1
        %v1721 = vadd.f32 %v1719, %v1720
        %1722 = vst [vmem:[%s203 + $0x8] sm:$0x1] %v1721
        %v1723 = vadd.f32 %v1713, %v1714
        %v1724 = vrot.slane %v1723, 4
        %v1725 = vadd.f32 %v1723, %v1724
        %v1726 = vrot.slane %v1725, 2
        %v1727 = vadd.f32 %v1725, %v1726
        %v1728 = vrot.slane %v1727, 1
        %v1729 = vadd.f32 %v1727, %v1728
        %1730 = vst [vmem:[%s203 + $0x15] sm:$0x1] %v1729
        %v1731 = vsub.f32 %v206, %v548
        %v1732 = vsub.f32 %v207, %v550
        %v1733 = vsub.f32 %v208, %v552
        %v1734 = vsub.f32 %v209, %v554
        %v1735 = vsub.f32 %v210, %v556
        %v1736 = vsub.f32 %v211, %v558
        %v1737 = vsub.f32 %v212, %v560
        %v1738 = vsub.f32 %v213, %v562
        %v1739 = vsub.f32 %v214, %v564
        %v1740 = vsub.f32 %v215, %v566
        %v1741 = vsub.f32 %v216, %v568
        %v1742 = vsub.f32 %v217, %v570
        %v1743 = vsub.f32 %v218, %v572
        %v1744 = vsub.f32 %v219, %v574
        %v1745 = vsub.f32 %v222, %v724
        %v1746 = vsub.f32 %v223, %v726
        %v1747 = vsub.f32 %v224, %v728
        %v1748 = vsub.f32 %v225, %v730
        %v1749 = vsub.f32 %v226, %v732
        %v1750 = vsub.f32 %v227, %v734
        %v1751 = vsub.f32 %v228, %v736
        %v1752 = vsub.f32 %v229, %v738
        %v1753 = vsub.f32 %v230, %v740
        %v1754 = vsub.f32 %v231, %v742
        %v1755 = vsub.f32 %v232, %v744
        %v1756 = vsub.f32 %v233, %v746
        %v1757 = vsub.f32 %v234, %v748
        %v1758 = vsub.f32 %v235, %v750
        %v1759 = vmul.f32 %v1731, %v1745
        %v1760 = vmul.f32 %v1732, %v1746
        %v1761 = vmul.f32 %v1733, %v1747
        %v1762 = vmul.f32 %v1734, %v1748
        %v1763 = vmul.f32 %v1735, %v1749
        %v1764 = vmul.f32 %v1736, %v1750
        %v1765 = vmul.f32 %v1737, %v1751
        %v1766 = vmul.f32 %v1738, %v1752
        %v1767 = vmul.f32 %v1739, %v1753
        %v1768 = vmul.f32 %v1740, %v1754
        %v1769 = vmul.f32 %v1741, %v1755
        %v1770 = vmul.f32 %v1742, %v1756
        %v1771 = vmul.f32 %v1743, %v1757
        %v1772 = vmul.f32 %v1744, %v1758
        %v1773 = vadd.f32 %v1759, %v1761
        %v1774 = vadd.f32 %v1773, %v1763
        %v1775 = vadd.f32 %v1774, %v1765
        %v1776 = vadd.f32 %v1775, %v1767
        %v1777 = vadd.f32 %v1776, %v1769
        %v1778 = vadd.f32 %v1777, %v1771
        %v1779 = vadd.f32 %v1760, %v1762
        %v1780 = vadd.f32 %v1779, %v1764
        %v1781 = vadd.f32 %v1780, %v1766
        %v1782 = vadd.f32 %v1781, %v1768
        %v1783 = vadd.f32 %v1782, %v1770
        %v1784 = vadd.f32 %v1783, %v1772
        %v1785 = vmul.f32 %v1745, %v1745
        %v1786 = vmul.f32 %v1746, %v1746
        %v1787 = vmul.f32 %v1747, %v1747
        %v1788 = vmul.f32 %v1748, %v1748
        %v1789 = vmul.f32 %v1749, %v1749
        %v1790 = vmul.f32 %v1750, %v1750
        %v1791 = vmul.f32 %v1751, %v1751
        %v1792 = vmul.f32 %v1752, %v1752
        %v1793 = vmul.f32 %v1753, %v1753
        %v1794 = vmul.f32 %v1754, %v1754
        %v1795 = vmul.f32 %v1755, %v1755
        %v1796 = vmul.f32 %v1756, %v1756
        %v1797 = vmul.f32 %v1757, %v1757
        %v1798 = vmul.f32 %v1758, %v1758
        %v1799 = vadd.f32 %v1785, %v1787
        %v1800 = vadd.f32 %v1799, %v1789
        %v1801 = vadd.f32 %v1800, %v1791
        %v1802 = vadd.f32 %v1801, %v1793
        %v1803 = vadd.f32 %v1802, %v1795
        %v1804 = vadd.f32 %v1803, %v1797
        %v1805 = vadd.f32 %v1786, %v1788
        %v1806 = vadd.f32 %v1805, %v1790
        %v1807 = vadd.f32 %v1806, %v1792
        %v1808 = vadd.f32 %v1807, %v1794
        %v1809 = vadd.f32 %v1808, %v1796
        %v1810 = vadd.f32 %v1809, %v1798
        %v1811 = vmul.f32 %v1778, %v785
        %v1812 = vmul.f32 %v1784, %v786
        %v1813 = vmul.f32 %v1804, %v785
        %v1814 = vmul.f32 %v1810, %v786
        %v1815 = vadd.f32 %v1811, %v1812
        %v1816 = vrot.slane %v1815, 4
        %v1817 = vadd.f32 %v1815, %v1816
        %v1818 = vrot.slane %v1817, 2
        %v1819 = vadd.f32 %v1817, %v1818
        %v1820 = vrot.slane %v1819, 1
        %v1821 = vadd.f32 %v1819, %v1820
        %1822 = vst [vmem:[%s203 + $0x9] sm:$0x1] %v1821
        %v1823 = vadd.f32 %v1813, %v1814
        %v1824 = vrot.slane %v1823, 4
        %v1825 = vadd.f32 %v1823, %v1824
        %v1826 = vrot.slane %v1825, 2
        %v1827 = vadd.f32 %v1825, %v1826
        %v1828 = vrot.slane %v1827, 1
        %v1829 = vadd.f32 %v1827, %v1828
        %1830 = vst [vmem:[%s203 + $0x16] sm:$0x1] %v1829
        %v1831 = vsub.f32 %v440, %v492
        %v1832 = vsub.f32 %v484, %v494
        %v1833 = vsub.f32 %v443, %v496
        %v1834 = vsub.f32 %v485, %v498
        %v1835 = vsub.f32 %v446, %v500
        %v1836 = vsub.f32 %v486, %v502
        %v1837 = vsub.f32 %v449, %v504
        %v1838 = vsub.f32 %v487, %v506
        %v1839 = vsub.f32 %v452, %v508
        %v1840 = vsub.f32 %v488, %v510
        %v1841 = vsub.f32 %v455, %v512
        %v1842 = vsub.f32 %v489, %v514
        %v1843 = vsub.f32 %v458, %v516
        %v1844 = vsub.f32 %v490, %v518
        %v1845 = vsub.f32 %v616, %v668
        %v1846 = vsub.f32 %v660, %v670
        %v1847 = vsub.f32 %v619, %v672
        %v1848 = vsub.f32 %v661, %v674
        %v1849 = vsub.f32 %v622, %v676
        %v1850 = vsub.f32 %v662, %v678
        %v1851 = vsub.f32 %v625, %v680
        %v1852 = vsub.f32 %v663, %v682
        %v1853 = vsub.f32 %v628, %v684
        %v1854 = vsub.f32 %v664, %v686
        %v1855 = vsub.f32 %v631, %v688
        %v1856 = vsub.f32 %v665, %v690
        %v1857 = vsub.f32 %v634, %v692
        %v1858 = vsub.f32 %v666, %v694
        %v1859 = vmul.f32 %v1831, %v1845
        %v1860 = vmul.f32 %v1832, %v1846
        %v1861 = vmul.f32 %v1833, %v1847
        %v1862 = vmul.f32 %v1834, %v1848
        %v1863 = vmul.f32 %v1835, %v1849
        %v1864 = vmul.f32 %v1836, %v1850
        %v1865 = vmul.f32 %v1837, %v1851
        %v1866 = vmul.f32 %v1838, %v1852
        %v1867 = vmul.f32 %v1839, %v1853
        %v1868 = vmul.f32 %v1840, %v1854
        %v1869 = vmul.f32 %v1841, %v1855
        %v1870 = vmul.f32 %v1842, %v1856
        %v1871 = vmul.f32 %v1843, %v1857
        %v1872 = vmul.f32 %v1844, %v1858
        %v1873 = vadd.f32 %v1859, %v1861
        %v1874 = vadd.f32 %v1873, %v1863
        %v1875 = vadd.f32 %v1874, %v1865
        %v1876 = vadd.f32 %v1875, %v1867
        %v1877 = vadd.f32 %v1876, %v1869
        %v1878 = vadd.f32 %v1877, %v1871
        %v1879 = vadd.f32 %v1860, %v1862
        %v1880 = vadd.f32 %v1879, %v1864
        %v1881 = vadd.f32 %v1880, %v1866
        %v1882 = vadd.f32 %v1881, %v1868
        %v1883 = vadd.f32 %v1882, %v1870
        %v1884 = vadd.f32 %v1883, %v1872
        %v1885 = vmul.f32 %v1845, %v1845
        %v1886 = vmul.f32 %v1846, %v1846
        %v1887 = vmul.f32 %v1847, %v1847
        %v1888 = vmul.f32 %v1848, %v1848
        %v1889 = vmul.f32 %v1849, %v1849
        %v1890 = vmul.f32 %v1850, %v1850
        %v1891 = vmul.f32 %v1851, %v1851
        %v1892 = vmul.f32 %v1852, %v1852
        %v1893 = vmul.f32 %v1853, %v1853
        %v1894 = vmul.f32 %v1854, %v1854
        %v1895 = vmul.f32 %v1855, %v1855
        %v1896 = vmul.f32 %v1856, %v1856
        %v1897 = vmul.f32 %v1857, %v1857
        %v1898 = vmul.f32 %v1858, %v1858
        %v1899 = vadd.f32 %v1885, %v1887
        %v1900 = vadd.f32 %v1899, %v1889
        %v1901 = vadd.f32 %v1900, %v1891
        %v1902 = vadd.f32 %v1901, %v1893
        %v1903 = vadd.f32 %v1902, %v1895
        %v1904 = vadd.f32 %v1903, %v1897
        %v1905 = vadd.f32 %v1886, %v1888
        %v1906 = vadd.f32 %v1905, %v1890
        %v1907 = vadd.f32 %v1906, %v1892
        %v1908 = vadd.f32 %v1907, %v1894
        %v1909 = vadd.f32 %v1908, %v1896
        %v1910 = vadd.f32 %v1909, %v1898
        %v1911 = vmul.f32 %v1878, %v785
        %v1912 = vmul.f32 %v1884, %v786
        %v1913 = vmul.f32 %v1904, %v785
        %v1914 = vmul.f32 %v1910, %v786
        %v1915 = vadd.f32 %v1911, %v1912
        %v1916 = vrot.slane %v1915, 4
        %v1917 = vadd.f32 %v1915, %v1916
        %v1918 = vrot.slane %v1917, 2
        %v1919 = vadd.f32 %v1917, %v1918
        %v1920 = vrot.slane %v1919, 1
        %v1921 = vadd.f32 %v1919, %v1920
        %1922 = vst [vmem:[%s203 + $0xa] sm:$0x1] %v1921
        %v1923 = vadd.f32 %v1913, %v1914
        %v1924 = vrot.slane %v1923, 4
        %v1925 = vadd.f32 %v1923, %v1924
        %v1926 = vrot.slane %v1925, 2
        %v1927 = vadd.f32 %v1925, %v1926
        %v1928 = vrot.slane %v1927, 1
        %v1929 = vadd.f32 %v1927, %v1928
        %1930 = vst [vmem:[%s203 + $0x17] sm:$0x1] %v1929
        %v1931 = vsub.f32 %v204, %v552
        %v1932 = vsub.f32 %v205, %v554
        %v1933 = vsub.f32 %v206, %v556
        %v1934 = vsub.f32 %v207, %v558
        %v1935 = vsub.f32 %v208, %v560
        %v1936 = vsub.f32 %v209, %v562
        %v1937 = vsub.f32 %v210, %v564
        %v1938 = vsub.f32 %v211, %v566
        %v1939 = vsub.f32 %v212, %v568
        %v1940 = vsub.f32 %v213, %v570
        %v1941 = vsub.f32 %v214, %v572
        %v1942 = vsub.f32 %v215, %v574
        %v1943 = vsub.f32 %v216, %v576
        %v1944 = vsub.f32 %v217, %v578
        %v1945 = vsub.f32 %v220, %v728
        %v1946 = vsub.f32 %v221, %v730
        %v1947 = vsub.f32 %v222, %v732
        %v1948 = vsub.f32 %v223, %v734
        %v1949 = vsub.f32 %v224, %v736
        %v1950 = vsub.f32 %v225, %v738
        %v1951 = vsub.f32 %v226, %v740
        %v1952 = vsub.f32 %v227, %v742
        %v1953 = vsub.f32 %v228, %v744
        %v1954 = vsub.f32 %v229, %v746
        %v1955 = vsub.f32 %v230, %v748
        %v1956 = vsub.f32 %v231, %v750
        %v1957 = vsub.f32 %v232, %v752
        %v1958 = vsub.f32 %v233, %v754
        %v1959 = vmul.f32 %v1931, %v1945
        %v1960 = vmul.f32 %v1932, %v1946
        %v1961 = vmul.f32 %v1933, %v1947
        %v1962 = vmul.f32 %v1934, %v1948
        %v1963 = vmul.f32 %v1935, %v1949
        %v1964 = vmul.f32 %v1936, %v1950
        %v1965 = vmul.f32 %v1937, %v1951
        %v1966 = vmul.f32 %v1938, %v1952
        %v1967 = vmul.f32 %v1939, %v1953
        %v1968 = vmul.f32 %v1940, %v1954
        %v1969 = vmul.f32 %v1941, %v1955
        %v1970 = vmul.f32 %v1942, %v1956
        %v1971 = vmul.f32 %v1943, %v1957
        %v1972 = vmul.f32 %v1944, %v1958
        %v1973 = vadd.f32 %v1959, %v1961
        %v1974 = vadd.f32 %v1973, %v1963
        %v1975 = vadd.f32 %v1974, %v1965
        %v1976 = vadd.f32 %v1975, %v1967
        %v1977 = vadd.f32 %v1976, %v1969
        %v1978 = vadd.f32 %v1977, %v1971
        %v1979 = vadd.f32 %v1960, %v1962
        %v1980 = vadd.f32 %v1979, %v1964
        %v1981 = vadd.f32 %v1980, %v1966
        %v1982 = vadd.f32 %v1981, %v1968
        %v1983 = vadd.f32 %v1982, %v1970
        %v1984 = vadd.f32 %v1983, %v1972
        %v1985 = vmul.f32 %v1945, %v1945
        %v1986 = vmul.f32 %v1946, %v1946
        %v1987 = vmul.f32 %v1947, %v1947
        %v1988 = vmul.f32 %v1948, %v1948
        %v1989 = vmul.f32 %v1949, %v1949
        %v1990 = vmul.f32 %v1950, %v1950
        %v1991 = vmul.f32 %v1951, %v1951
        %v1992 = vmul.f32 %v1952, %v1952
        %v1993 = vmul.f32 %v1953, %v1953
        %v1994 = vmul.f32 %v1954, %v1954
        %v1995 = vmul.f32 %v1955, %v1955
        %v1996 = vmul.f32 %v1956, %v1956
        %v1997 = vmul.f32 %v1957, %v1957
        %v1998 = vmul.f32 %v1958, %v1958
        %v1999 = vadd.f32 %v1985, %v1987
        %v2000 = vadd.f32 %v1999, %v1989
        %v2001 = vadd.f32 %v2000, %v1991
        %v2002 = vadd.f32 %v2001, %v1993
        %v2003 = vadd.f32 %v2002, %v1995
        %v2004 = vadd.f32 %v2003, %v1997
        %v2005 = vadd.f32 %v1986, %v1988
        %v2006 = vadd.f32 %v2005, %v1990
        %v2007 = vadd.f32 %v2006, %v1992
        %v2008 = vadd.f32 %v2007, %v1994
        %v2009 = vadd.f32 %v2008, %v1996
        %v2010 = vadd.f32 %v2009, %v1998
        %v2011 = vmul.f32 %v1978, %v785
        %v2012 = vmul.f32 %v1984, %v786
        %v2013 = vmul.f32 %v2004, %v785
        %v2014 = vmul.f32 %v2010, %v786
        %v2015 = vadd.f32 %v2011, %v2012
        %v2016 = vrot.slane %v2015, 4
        %v2017 = vadd.f32 %v2015, %v2016
        %v2018 = vrot.slane %v2017, 2
        %v2019 = vadd.f32 %v2017, %v2018
        %v2020 = vrot.slane %v2019, 1
        %v2021 = vadd.f32 %v2019, %v2020
        %2022 = vst [vmem:[%s203 + $0xb] sm:$0x1] %v2021
        %v2023 = vadd.f32 %v2013, %v2014
        %v2024 = vrot.slane %v2023, 4
        %v2025 = vadd.f32 %v2023, %v2024
        %v2026 = vrot.slane %v2025, 2
        %v2027 = vadd.f32 %v2025, %v2026
        %v2028 = vrot.slane %v2027, 1
        %v2029 = vadd.f32 %v2027, %v2028
        %2030 = vst [vmem:[%s203 + $0x18] sm:$0x1] %v2029
        %v2031 = vsub.f32 %v437, %v496
        %v2032 = vsub.f32 %v483, %v498
        %v2033 = vsub.f32 %v440, %v500
        %v2034 = vsub.f32 %v484, %v502
        %v2035 = vsub.f32 %v443, %v504
        %v2036 = vsub.f32 %v485, %v506
        %v2037 = vsub.f32 %v446, %v508
        %v2038 = vsub.f32 %v486, %v510
        %v2039 = vsub.f32 %v449, %v512
        %v2040 = vsub.f32 %v487, %v514
        %v2041 = vsub.f32 %v452, %v516
        %v2042 = vsub.f32 %v488, %v518
        %v2043 = vsub.f32 %v455, %v520
        %v2044 = vsub.f32 %v489, %v522
        %v2045 = vsub.f32 %v613, %v672
        %v2046 = vsub.f32 %v659, %v674
        %v2047 = vsub.f32 %v616, %v676
        %v2048 = vsub.f32 %v660, %v678
        %v2049 = vsub.f32 %v619, %v680
        %v2050 = vsub.f32 %v661, %v682
        %v2051 = vsub.f32 %v622, %v684
        %v2052 = vsub.f32 %v662, %v686
        %v2053 = vsub.f32 %v625, %v688
        %v2054 = vsub.f32 %v663, %v690
        %v2055 = vsub.f32 %v628, %v692
        %v2056 = vsub.f32 %v664, %v694
        %v2057 = vsub.f32 %v631, %v696
        %v2058 = vsub.f32 %v665, %v698
        %v2059 = vmul.f32 %v2031, %v2045
        %v2060 = vmul.f32 %v2032, %v2046
        %v2061 = vmul.f32 %v2033, %v2047
        %v2062 = vmul.f32 %v2034, %v2048
        %v2063 = vmul.f32 %v2035, %v2049
        %v2064 = vmul.f32 %v2036, %v2050
        %v2065 = vmul.f32 %v2037, %v2051
        %v2066 = vmul.f32 %v2038, %v2052
        %v2067 = vmul.f32 %v2039, %v2053
        %v2068 = vmul.f32 %v2040, %v2054
        %v2069 = vmul.f32 %v2041, %v2055
        %v2070 = vmul.f32 %v2042, %v2056
        %v2071 = vmul.f32 %v2043, %v2057
        %v2072 = vmul.f32 %v2044, %v2058
        %v2073 = vadd.f32 %v2059, %v2061
        %v2074 = vadd.f32 %v2073, %v2063
        %v2075 = vadd.f32 %v2074, %v2065
        %v2076 = vadd.f32 %v2075, %v2067
        %v2077 = vadd.f32 %v2076, %v2069
        %v2078 = vadd.f32 %v2077, %v2071
        %v2079 = vadd.f32 %v2060, %v2062
        %v2080 = vadd.f32 %v2079, %v2064
        %v2081 = vadd.f32 %v2080, %v2066
        %v2082 = vadd.f32 %v2081, %v2068
        %v2083 = vadd.f32 %v2082, %v2070
        %v2084 = vadd.f32 %v2083, %v2072
        %v2085 = vmul.f32 %v2045, %v2045
        %v2086 = vmul.f32 %v2046, %v2046
        %v2087 = vmul.f32 %v2047, %v2047
        %v2088 = vmul.f32 %v2048, %v2048
        %v2089 = vmul.f32 %v2049, %v2049
        %v2090 = vmul.f32 %v2050, %v2050
        %v2091 = vmul.f32 %v2051, %v2051
        %v2092 = vmul.f32 %v2052, %v2052
        %v2093 = vmul.f32 %v2053, %v2053
        %v2094 = vmul.f32 %v2054, %v2054
        %v2095 = vmul.f32 %v2055, %v2055
        %v2096 = vmul.f32 %v2056, %v2056
        %v2097 = vmul.f32 %v2057, %v2057
        %v2098 = vmul.f32 %v2058, %v2058
        %v2099 = vadd.f32 %v2085, %v2087
        %v2100 = vadd.f32 %v2099, %v2089
        %v2101 = vadd.f32 %v2100, %v2091
        %v2102 = vadd.f32 %v2101, %v2093
        %v2103 = vadd.f32 %v2102, %v2095
        %v2104 = vadd.f32 %v2103, %v2097
        %v2105 = vadd.f32 %v2086, %v2088
        %v2106 = vadd.f32 %v2105, %v2090
        %v2107 = vadd.f32 %v2106, %v2092
        %v2108 = vadd.f32 %v2107, %v2094
        %v2109 = vadd.f32 %v2108, %v2096
        %v2110 = vadd.f32 %v2109, %v2098
        %v2111 = vmul.f32 %v2078, %v785
        %v2112 = vmul.f32 %v2084, %v786
        %v2113 = vmul.f32 %v2104, %v785
        %v2114 = vmul.f32 %v2110, %v786
        %v2115 = vadd.f32 %v2111, %v2112
        %v2116 = vrot.slane %v2115, 4
        %v2117 = vadd.f32 %v2115, %v2116
        %v2118 = vrot.slane %v2117, 2
        %v2119 = vadd.f32 %v2117, %v2118
        %v2120 = vrot.slane %v2119, 1
        %v2121 = vadd.f32 %v2119, %v2120
        %2122 = vst [vmem:[%s203 + $0xc] sm:$0x1] %v2121
        %v2123 = vadd.f32 %v2113, %v2114
        %v2124 = vrot.slane %v2123, 4
        %v2125 = vadd.f32 %v2123, %v2124
        %v2126 = vrot.slane %v2125, 2
        %v2127 = vadd.f32 %v2125, %v2126
        %v2128 = vrot.slane %v2127, 1
        %v2129 = vadd.f32 %v2127, %v2128
        %2130 = vst [vmem:[%s203 + $0x19] sm:$0x1] %v2129
        %2131 = vst [vmem:[%s203 + $0x1a] sm:$0x1] %v417
        %p2132 = scmp.lt.s32.totalorder %s19, 3
        %s2133 = scalar_select %p2132, %s19, 3
        %s2134 = smul.addr %s2133, 4
        %s2135 = smul.addr %s2134, 8
        %s2136 = scalar_lea.vmem %s2, %s2135
        // Predicated region
        $region37: #{tpu_custom_call.1} parent=27 // pred_check
          %p2137 = pneg %p89
        $region38: #{tpu_custom_call.1} parent=27 // pred_check_branch
          %2139 = sbr.rel (%p2137) target = $region40
        $region39: #{tpu_custom_call.1} parent=27 // pred_region
          _
        $region40: #{tpu_custom_call.1} parent=27 // pred_fallthru
          _
      $region28: #{tpu_custom_call.1} parent=5 // pred_fallthru
        _
      %p2140 = scmp.le.s32.totalorder 2, %s14
      // Predicated region
      $region41: #{tpu_custom_call.1} parent=5 // pred_check
        %p2141 = pneg %p2140
      $region42: #{tpu_custom_call.1} parent=5 // pred_check_branch
        %2143 = sbr.rel (%p2141) target = $region44
      $region43: #{tpu_custom_call.1} parent=5 // pred_region
        %s2144 = ssub.s32 %s14, 2
        // Predicated region
        $region45: #{tpu_custom_call.1} parent=43 // pred_check
          %p2145 = pneg %p95
        $region46: #{tpu_custom_call.1} parent=43 // pred_check_branch
          %2147 = sbr.rel (%p2145) target = $region48
        $region47: #{tpu_custom_call.1} parent=43 // pred_region
          %p2148 = scmp.lt.s32.totalorder %s20, 3
          %s2149 = scalar_select %p2148, %s20, 3
          %s2150 = smul.addr %s2149, 4
          %s2151 = smul.addr %s2150, 8
          %s2152 = scalar_lea.vmem %s2, %s2151
        $region48: #{tpu_custom_call.1} parent=43 // pred_fallthru
          _
      $region44: #{tpu_custom_call.1} parent=5 // pred_fallthru
        _
    $region6: #{tpu_custom_call.1} parent=1 // loop_footer
      %s18 = sadd.s32 1, %s14
    $region7: #{tpu_custom_call.1} parent=1 // loop_footer_branch
      %13 = sbr.rel target = $region3
    $region8: #{tpu_custom_call.1} parent=1 // loop_exit
      _
    %2153 = vsyncpa [#allocation3], 1
    %s2154 = scalar_lea.sflag [#allocation3], 1
    %2155 = vsyncpa %s2154, 1
    %2156 = vsyncpa [#allocation5], 1
    %s2157 = scalar_lea.sflag [#allocation5], 1
    %2158 = vsyncpa %s2157, 1

</llo_original>
